<compile_context>
chip_gen: v7x
topology: tpu7x:2x2x1
jax: 0.10.0
libtpu: 0.0.40
codegen_flags: <defaults>
</compile_context>

<pallas_src>
import functools

import jax
import jax.numpy as jnp
import numpy as np
from jax import lax
from jax.experimental import pallas as pl
from jax.experimental.pallas import tpu as pltpu


def _yolo_loss_kernel(box_ref, preds_ref, targets_ref, out_ref,
                      cls_acc_ref, objsum_ref, *,
                      S, B, C, batch, lambda_coord, lambda_noobj):
    """One grid step == one batch element of the class/obj accumulation.

    The batch-coupled box/IOU part (which, through the module's buggy
    broadcasting, only touches the batch axis via sum_a obj[a]) is evaluated
    once at the last grid step from the small resident box-field slab.
    """
    step = pl.program_id(0)
    f32 = jnp.float32

    @pl.when(step == 0)
    def _init():
        cls_acc_ref[...] = jnp.zeros_like(cls_acc_ref)
        objsum_ref[...] = jnp.zeros_like(objsum_ref)

    # ---- per-batch-element class MSE + objectness column sum --------------
    p_blk = preds_ref[...]                              # (1, S, S, B*(5+C))
    t_blk = targets_ref[...]
    obj_blk = t_blk[..., 4:5]                           # (1, S, S, 1)
    dcls = p_blk[..., 5 * B:] - t_blk[..., 5 * B:]      # (1, S, S, B*C)
    # TODO(synk): for large C route this lane reduction through the MXU
    # (dot with a ones vector) instead of the XLU.
    cls_acc_ref[...] += jnp.sum(obj_blk * (dcls * dcls))
    objsum_ref[...] += obj_blk

    # ---- box / IOU part: once, at the last grid step -----------------------
    @pl.when(step == batch - 1)
    def _finalize():
        inv_S = 1.0 / float(S)
        pfields = [box_ref[f] for f in range(4)]        # px,py,pw,ph (b,S,S,B)
        tfields = [box_ref[4 + f] for f in range(4)]    # tx,ty,tw,th

        # grid shifts generated in-kernel; for a row slice (batch, Scol, B)
        # the x-shift varies along the Scol axis (axis 1).
        col_shift_rs = lax.broadcasted_iota(
            jnp.int32, (batch, S, B), 1).astype(f32) * inv_S

        # get_IOU reproduces the original's grid-row indexing: for lane
        # segment f of cat([x', y', w^2, h^2], -1) the four IOU "coordinates"
        # are the transformed field f at grid rows 0..3.
        def seg_coords(field, f):
            if f == 0:                                   # x-centres: + sx(col)
                return [field[:, r] + col_shift_rs for r in range(4)]
            if f == 1:                                   # y-centres: + sy(row)
                return [field[:, r] + (r * inv_S) for r in range(4)]
            return [jnp.square(field[:, r]) for r in range(4)]   # w^2 / h^2

        def seg_iou(c1, c2):
            x1, y1, w1, h1 = c1
            x2, y2, w2, h2 = c2
            tlx = jnp.maximum(x1 - w1 * 0.5, x2 - w2 * 0.5)
            tly = jnp.maximum(y1 - h1 * 0.5, y2 - h2 * 0.5)
            brx = jnp.minimum(x1 + w1 * 0.5, x2 + w2 * 0.5)
            bry = jnp.minimum(y1 + h1 * 0.5, y2 + h2 * 0.5)
            inter = jnp.maximum(brx - tlx, 0.0) * jnp.maximum(bry - tly, 0.0)
            union = w1 * h1 + w2 * h2 - inter
            # exact divide kept: approx reciprocal could flip the argmax below
            return inter / union + 1e-6                  # (batch, Scol, B)

        ious = [seg_iou(seg_coords(pfields[f], f), seg_coords(tfields[f], f))
                for f in range(4)]

        # global max over all 4B concatenated lanes == max of segment maxes
        gmax = ious[0].max(axis=-1, keepdims=True)
        for f in range(1, 4):
            gmax = jnp.maximum(gmax, ious[f].max(axis=-1, keepdims=True))

        # first-occurrence argmax can only land on a box lane (< B) if it
        # lies in segment 0, so only segment 0 is inspected.
        lane = lax.broadcasted_iota(jnp.int32, (batch, S, B), 2)
        cand = jnp.where(ious[0] == gmax, lane, jnp.int32(B))
        first = jnp.min(cand, axis=-1, keepdims=True)    # (batch, S, 1)
        is_max = (lane == first).astype(f32)             # (batch, S, B)

        # Summing the original 4-D broadcast product over the batch axis only
        # touches the obj indicator, so sum_a obj[a] (accumulated across grid
        # steps) replaces the (1,b,S,B)*(b,S,S,1) mask.
        objsum = objsum_ref[0]                           # (S, S, 1)
        wbox = objsum * is_max                           # (N, N, N)

        # lanes 0..3 of the concatenated boxes are the x-fields of boxes
        # 0..3; the grid shift cancels in pred - target.
        dx = pfields[0][..., :4] - tfields[0][..., :4]   # (b, S, S, 4)
        coord_elem = jnp.sum(dx * dx, axis=-1)           # (b, S, S)

        # lane 4 of the concatenation ("objectness" in the original, really a
        # coordinate field because of the 4B concat): general for any B >= 4.
        seg4, off4 = divmod(4, B)
        if seg4 == 0:
            shift4 = lax.broadcasted_iota(
                jnp.int32, (batch, S, S), 2).astype(f32) * inv_S
            pb4 = pfields[0][..., off4] + shift4
        elif seg4 == 1:
            shift4 = lax.broadcasted_iota(
                jnp.int32, (batch, S, S), 1).astype(f32) * inv_S
            pb4 = pfields[1][..., off4] + shift4
        else:
            pb4 = jnp.square(pfields[seg4][..., off4])

        obj_term = wbox * jnp.square(pb4 - gmax)
        noobj_term = (float(batch) - wbox) * jnp.square(pb4)
        coord_term = wbox * coord_elem

        # single fused reduction for the whole box part
        box_total = jnp.sum(lambda_coord * coord_term + obj_term
                            + lambda_noobj * noobj_term)

        out_ref[...] = (cls_acc_ref[...] + box_total) * (1.0 / float(batch))


def yolo_loss_pallas(preds, targets, *, S, B, C,
                     lambda_coord=5.0, lambda_noobj=0.5):
    batch = preds.shape[0]
    D = B * (5 + C)
    if not (batch == S == B):
        raise ValueError(
            f"YOLOLoss broadcasting requires batch == S == B "
            f"(got batch={batch}, S={S}, B={B}).")
    if S < 4:
        raise ValueError("get_IOU indexes grid rows 0..3, so S >= 4 is required.")

    preds4 = preds.reshape(batch, S, S, D).astype(jnp.float32)
    targets4 = targets.reshape(batch, S, S, D).astype(jnp.float32)

    # One wrapper-side repack into a single contiguous slab of the 8 raw box
    # fields: (8, batch, S, S, B).  Class channels / obj indicator are NOT
    # re-materialized in HBM — the kernel slices them out of preds4/targets4.
    pbox = preds4[..., :5 * B].reshape(batch, S, S, B, 5)
    tbox = targets4[..., :5 * B].reshape(batch, S, S, B, 5)
    box_slab = jnp.concatenate(
        [jnp.moveaxis(pbox[..., :4], -1, 0),
         jnp.moveaxis(tbox[..., :4], -1, 0)], axis=0)

    kernel = functools.partial(
        _yolo_loss_kernel, S=S, B=B, C=C, batch=batch,
        lambda_coord=float(lambda_coord), lambda_noobj=float(lambda_noobj))

    # TODO(synk): the box slab is kept whole-array in VMEM (fine up to
    # batch==S==B ~ 16); for larger N it should get its own batch grid too.
    grid_spec = pltpu.PrefetchScalarGridSpec(
        num_scalar_prefetch=0,
        grid=(batch,),
        in_specs=[
            # box-field slab: constant index map -> DMA'd once, stays resident
            pl.BlockSpec((8, batch, S, S, B), lambda b: (0, 0, 0, 0, 0)),
            # per-batch-element blocks of raw preds / targets
            pl.BlockSpec((1, S, S, D), lambda b: (b, 0, 0, 0)),
            pl.BlockSpec((1, S, S, D), lambda b: (b, 0, 0, 0)),
        ],
        out_specs=pl.BlockSpec((1, 1), lambda b: (0, 0)),
        scratch_shapes=[
            pltpu.VMEM((1, 1), jnp.float32),         # class-MSE accumulator
            pltpu.VMEM((1, S, S, 1), jnp.float32),   # sum_batch obj indicator
        ],
    )
    out = pl.pallas_call(
        kernel,
        out_shape=jax.ShapeDtypeStruct((1, 1), jnp.float32),
        grid_spec=grid_spec,
        compiler_params=pltpu.CompilerParams(
            dimension_semantics=("arbitrary",),      # accumulation grid axis
            vmem_limit_bytes=32 * 1024 * 1024),
    )(box_slab, preds4, targets4)
    return out[0, 0]


def yolo_loss_ref(preds, targets, *, S, B, C,
                  lambda_coord=5.0, lambda_noobj=0.5):
    """Pure-JAX reference mirroring the PyTorch forward exactly."""
    batch = preds.shape[0]
    D = B * (5 + C)
    preds = preds.reshape(batch, S, S, D).astype(jnp.float32)
    targets = targets.reshape(batch, S, S, D).astype(jnp.float32)

    shift = jnp.arange(S, dtype=jnp.int32).astype(jnp.float32) / float(S)
    sx = jnp.broadcast_to(shift[None, None, :, None], (1, S, S, B))
    sy = jnp.broadcast_to(shift[None, :, None, None], (1, S, S, B))

    pbox = preds[..., :5 * B].reshape(batch, S, S, B, 5)
    tbox = targets[..., :5 * B].reshape(batch, S, S, B, 5)
    pred_boxes = jnp.concatenate(
        [pbox[..., 0] + sx, pbox[..., 1] + sy,
         pbox[..., 2] ** 2, pbox[..., 3] ** 2], axis=-1)
    target_boxes = jnp.concatenate(
        [tbox[..., 0] + sx, tbox[..., 1] + sy,
         tbox[..., 2] ** 2, tbox[..., 3] ** 2], axis=-1)

    b1, b2 = pred_boxes, target_boxes
    tlx = jnp.maximum(b1[:, 0] - b1[:, 2] / 2, b2[:, 0] - b2[:, 2] / 2)
    tly = jnp.maximum(b1[:, 1] - b1[:, 3] / 2, b2[:, 1] - b2[:, 3] / 2)
    brx = jnp.minimum(b1[:, 0] + b1[:, 2] / 2, b2[:, 0] + b2[:, 2] / 2)
    bry = jnp.minimum(b1[:, 1] + b1[:, 3] / 2, b2[:, 1] + b2[:, 3] / 2)
    inter = jnp.maximum(brx - tlx, 0.0) * jnp.maximum(bry - tly, 0.0)
    union = b1[:, 2] * b1[:, 3] + b2[:, 2] * b2[:, 3] - inter
    iou = inter / union + 1e-6

    max_iou_val = jnp.max(iou, axis=-1, keepdims=True)
    max_iou_idx = jnp.argmax(iou, axis=-1)
    max_iou_idx = jnp.broadcast_to(
        max_iou_idx[None, :, :, None], (1, batch, S, B))
    bb_idxs = jnp.broadcast_to(
        jnp.arange(B)[None, None, None, :], (1, batch, S, B))
    is_max = (max_iou_idx == bb_idxs).astype(jnp.float32)

    obj = targets[..., 4:5]
    cls_mse = jnp.sum(obj * (preds[..., 5 * B:] - targets[..., 5 * B:]) ** 2)
    imbo = is_max * obj
    obj_mse = jnp.sum(imbo * (pred_boxes[..., 4] - max_iou_val) ** 2)
    x_mse = jnp.sum(imbo * (pred_boxes[..., 0] - target_boxes[..., 0]) ** 2)
    y_mse = jnp.sum(imbo * (pred_boxes[..., 1] - target_boxes[..., 1]) ** 2)
    w_mse = jnp.sum(imbo * (pred_boxes[..., 2] - target_boxes[..., 2]) ** 2)
    h_mse = jnp.sum(imbo * (pred_boxes[..., 3] - target_boxes[..., 3]) ** 2)
    no_obj_mse = jnp.sum((1.0 - imbo) * pred_boxes[..., 4] ** 2)

    loss = lambda_coord * (x_mse + y_mse + w_mse + h_mse)
    loss = loss + cls_mse + obj_mse
    loss = loss + lambda_noobj * no_obj_mse
    return loss / batch


if __name__ == "__main__":
    # The module's broadcasting only works when batch == S == B (and S >= 4
    # for get_IOU's row indexing), so use batch = S = B = 4, C = 3.
    S = 4
    B = 4
    C = 3
    batch = 4
    D = B * (5 + C)  # 32

    key = jax.random.PRNGKey(0)
    k1, k2, k3 = jax.random.split(key, 3)
    preds = jax.random.normal(k1, (batch, S * S * D), dtype=jnp.float32)
    targets = jax.random.normal(k2, (batch, S, S, D), dtype=jnp.float32) * 0.5
    # make the obj-indicator channel binary, like real YOLO targets
    obj_bits = (jax.random.uniform(k3, (batch, S, S)) > 0.5).astype(jnp.float32)
    targets = targets.at[..., 4].set(obj_bits)

    loss_kernel = yolo_loss_pallas(preds, targets, S=S, B=B, C=C)
    loss_kernel = jax.block_until_ready(loss_kernel)

    loss_ref = yolo_loss_ref(preds, targets, S=S, B=B, C=C)
    np.testing.assert_allclose(
        np.asarray(loss_kernel), np.asarray(loss_ref), rtol=2e-3, atol=2e-3)

    print("KERNEL_OK")
</pallas_src>

<mosaic_0001>
module attributes {stable_mosaic.version = 11 : i64} {
  func.func @_yolo_loss_kernel(%arg0: i32, %arg1: memref<8x4x4x4x4xf32, #tpu.memory_space<vmem>>, %arg2: memref<1x4x4x32xf32, #tpu.memory_space<vmem>>, %arg3: memref<1x4x4x32xf32, #tpu.memory_space<vmem>>, %arg4: memref<1x1xf32, #tpu.memory_space<vmem>>, %arg5: memref<1x1xf32, #tpu.memory_space<vmem>>, %arg6: memref<1x4x4x1xf32, #tpu.memory_space<vmem>>) attributes {dimension_semantics = [#tpu.dimension_semantics<arbitrary>], iteration_bounds = array<i64: 4>, scalar_prefetch = 0 : i64, scratch_operands = 2 : i64, tpu.core_type = #tpu.core_type<tc>, window_params = [{pipeline_mode = #tpu.pipeline_mode<synchronous>, transform_indices = @transform_0, window_bounds = array<i64: 8, 4, 4, 4, 4>}, {transform_indices = @transform_1, window_bounds = array<i64: 1, 4, 4, 32>}, {transform_indices = @transform_2, window_bounds = array<i64: 1, 4, 4, 32>}, {pipeline_mode = #tpu.pipeline_mode<synchronous>, transform_indices = @transform_3, window_bounds = array<i64: 1, 1>}]} {
    %c0_i32 = arith.constant 0 : i32
    %0 = arith.cmpi eq, %arg0, %c0_i32 : i32
    %1 = arith.extui %0 : i1 to i32
    %c0_i32_0 = arith.constant 0 : i32
    %2 = arith.cmpi ne, %1, %c0_i32_0 : i32
    scf.if %2 {
      %cst_21 = arith.constant 0.000000e+00 : f32
      %26 = vector.broadcast %cst_21 : f32 to vector<1x1xf32>
      %c0_22 = arith.constant 0 : index
      %c0_23 = arith.constant 0 : index
      %27 = vector.load %arg5[%c0_22, %c0_23] : memref<1x1xf32, #tpu.memory_space<vmem>>, vector<1x1xf32>
      tpu.vector_store %arg5[%c0_22, %c0_23], %26 {strides = array<i32>} : memref<1x1xf32, #tpu.memory_space<vmem>>, vector<1x1xf32>,
      %cst_24 = arith.constant 0.000000e+00 : f32
      %28 = vector.broadcast %cst_24 : f32 to vector<1x4x4x1xf32>
      %c0_25 = arith.constant 0 : index
      %c0_26 = arith.constant 0 : index
      %c0_27 = arith.constant 0 : index
      %c0_28 = arith.constant 0 : index
      %29 = vector.load %arg6[%c0_25, %c0_26, %c0_27, %c0_28] : memref<1x4x4x1xf32, #tpu.memory_space<vmem>>, vector<1x4x4x1xf32>
      tpu.vector_store %arg6[%c0_25, %c0_26, %c0_27, %c0_28], %28 {strides = array<i32>} : memref<1x4x4x1xf32, #tpu.memory_space<vmem>>, vector<1x4x4x1xf32>,
    } else {
    }
    %c0 = arith.constant 0 : index
    %c0_1 = arith.constant 0 : index
    %c0_2 = arith.constant 0 : index
    %c0_3 = arith.constant 0 : index
    %3 = vector.load %arg2[%c0, %c0_1, %c0_2, %c0_3] : memref<1x4x4x32xf32, #tpu.memory_space<vmem>>, vector<1x4x4x32xf32>
    %c0_4 = arith.constant 0 : index
    %c0_5 = arith.constant 0 : index
    %c0_6 = arith.constant 0 : index
    %c0_7 = arith.constant 0 : index
    %4 = vector.load %arg3[%c0_4, %c0_5, %c0_6, %c0_7] : memref<1x4x4x32xf32, #tpu.memory_space<vmem>>, vector<1x4x4x32xf32>
    %5 = vector.extract_strided_slice %4 {offsets = [0, 0, 0, 4], sizes = [1, 4, 4, 1], strides = [1, 1, 1, 1]} : vector<1x4x4x32xf32> to vector<1x4x4x1xf32>
    %6 = vector.extract_strided_slice %3 {offsets = [0, 0, 0, 20], sizes = [1, 4, 4, 12], strides = [1, 1, 1, 1]} : vector<1x4x4x32xf32> to vector<1x4x4x12xf32>
    %7 = vector.extract_strided_slice %4 {offsets = [0, 0, 0, 20], sizes = [1, 4, 4, 12], strides = [1, 1, 1, 1]} : vector<1x4x4x32xf32> to vector<1x4x4x12xf32>
    %8 = arith.subf %6, %7 : vector<1x4x4x12xf32>
    %c0_8 = arith.constant 0 : index
    %c0_9 = arith.constant 0 : index
    %9 = vector.load %arg5[%c0_8, %c0_9] : memref<1x1xf32, #tpu.memory_space<vmem>>, vector<1x1xf32>
    %10 = arith.mulf %8, %8 : vector<1x4x4x12xf32>
    %11 = vector.broadcast %5 : vector<1x4x4x1xf32> to vector<1x4x4x12xf32>
    %12 = arith.mulf %11, %10 : vector<1x4x4x12xf32>
    %13 = vector.shape_cast %12 : vector<1x4x4x12xf32> to vector<1x1x4x4x12xf32>
    %cst = arith.constant dense<0.000000e+00> : vector<1xf32>
    %14 = vector.multi_reduction <add>, %13, %cst [1, 2, 3, 4] : vector<1x1x4x4x12xf32> to vector<1xf32>
    %15 = vector.shape_cast %14 : vector<1xf32> to vector<1x1x1x1x1xf32>
    %16 = vector.extract %15[0, 0, 0, 0, 0] : f32 from vector<1x1x1x1x1xf32>
    %17 = vector.broadcast %16 : f32 to vector<1x1xf32>
    %18 = arith.addf %9, %17 : vector<1x1xf32>
    %c0_10 = arith.constant 0 : index
    %c0_11 = arith.constant 0 : index
    %19 = vector.load %arg5[%c0_10, %c0_11] : memref<1x1xf32, #tpu.memory_space<vmem>>, vector<1x1xf32>
    tpu.vector_store %arg5[%c0_10, %c0_11], %18 {strides = array<i32>} : memref<1x1xf32, #tpu.memory_space<vmem>>, vector<1x1xf32>,
    %c0_12 = arith.constant 0 : index
    %c0_13 = arith.constant 0 : index
    %c0_14 = arith.constant 0 : index
    %c0_15 = arith.constant 0 : index
    %20 = vector.load %arg6[%c0_12, %c0_13, %c0_14, %c0_15] : memref<1x4x4x1xf32, #tpu.memory_space<vmem>>, vector<1x4x4x1xf32>
    %21 = arith.addf %20, %5 : vector<1x4x4x1xf32>
    %c0_16 = arith.constant 0 : index
    %c0_17 = arith.constant 0 : index
    %c0_18 = arith.constant 0 : index
    %c0_19 = arith.constant 0 : index
    %22 = vector.load %arg6[%c0_16, %c0_17, %c0_18, %c0_19] : memref<1x4x4x1xf32, #tpu.memory_space<vmem>>, vector<1x4x4x1xf32>
    tpu.vector_store %arg6[%c0_16, %c0_17, %c0_18, %c0_19], %21 {strides = array<i32>} : memref<1x4x4x1xf32, #tpu.memory_space<vmem>>, vector<1x4x4x1xf32>,
    %c3_i32 = arith.constant 3 : i32
    %23 = arith.cmpi eq, %arg0, %c3_i32 : i32
    %24 = arith.extui %23 : i1 to i32
    %c0_i32_20 = arith.constant 0 : i32
    %25 = arith.cmpi ne, %24, %c0_i32_20 : i32
    scf.if %25 {
      %c0_21 = arith.constant 0 : index
      %c0_22 = arith.constant 0 : index
      %c0_23 = arith.constant 0 : index
      %c0_24 = arith.constant 0 : index
      %c0_25 = arith.constant 0 : index
      %26 = vector.load %arg1[%c0_21, %c0_22, %c0_23, %c0_24, %c0_25] : memref<8x4x4x4x4xf32, #tpu.memory_space<vmem>>, vector<1x4x4x4x4xf32>
      %27 = vector.shape_cast %26 : vector<1x4x4x4x4xf32> to vector<4x4x4x4xf32>
      %c1 = arith.constant 1 : index
      %c0_26 = arith.constant 0 : index
      %c0_27 = arith.constant 0 : index
      %c0_28 = arith.constant 0 : index
      %c0_29 = arith.constant 0 : index
      %28 = vector.load %arg1[%c1, %c0_26, %c0_27, %c0_28, %c0_29] : memref<8x4x4x4x4xf32, #tpu.memory_space<vmem>>, vector<1x4x4x4x4xf32>
      %29 = vector.shape_cast %28 : vector<1x4x4x4x4xf32> to vector<4x4x4x4xf32>
      %c2 = arith.constant 2 : index
      %c0_30 = arith.constant 0 : index
      %c0_31 = arith.constant 0 : index
      %c0_32 = arith.constant 0 : index
      %c0_33 = arith.constant 0 : index
      %30 = vector.load %arg1[%c2, %c0_30, %c0_31, %c0_32, %c0_33] : memref<8x4x4x4x4xf32, #tpu.memory_space<vmem>>, vector<1x4x4x4x4xf32>
      %31 = vector.shape_cast %30 : vector<1x4x4x4x4xf32> to vector<4x4x4x4xf32>
      %c3 = arith.constant 3 : index
      %c0_34 = arith.constant 0 : index
      %c0_35 = arith.constant 0 : index
      %c0_36 = arith.constant 0 : index
      %c0_37 = arith.constant 0 : index
      %32 = vector.load %arg1[%c3, %c0_34, %c0_35, %c0_36, %c0_37] : memref<8x4x4x4x4xf32, #tpu.memory_space<vmem>>, vector<1x4x4x4x4xf32>
      %33 = vector.shape_cast %32 : vector<1x4x4x4x4xf32> to vector<4x4x4x4xf32>
      %c4 = arith.constant 4 : index
      %c0_38 = arith.constant 0 : index
      %c0_39 = arith.constant 0 : index
      %c0_40 = arith.constant 0 : index
      %c0_41 = arith.constant 0 : index
      %34 = vector.load %arg1[%c4, %c0_38, %c0_39, %c0_40, %c0_41] : memref<8x4x4x4x4xf32, #tpu.memory_space<vmem>>, vector<1x4x4x4x4xf32>
      %35 = vector.shape_cast %34 : vector<1x4x4x4x4xf32> to vector<4x4x4x4xf32>
      %c5 = arith.constant 5 : index
      %c0_42 = arith.constant 0 : index
      %c0_43 = arith.constant 0 : index
      %c0_44 = arith.constant 0 : index
      %c0_45 = arith.constant 0 : index
      %36 = vector.load %arg1[%c5, %c0_42, %c0_43, %c0_44, %c0_45] : memref<8x4x4x4x4xf32, #tpu.memory_space<vmem>>, vector<1x4x4x4x4xf32>
      %37 = vector.shape_cast %36 : vector<1x4x4x4x4xf32> to vector<4x4x4x4xf32>
      %c6 = arith.constant 6 : index
      %c0_46 = arith.constant 0 : index
      %c0_47 = arith.constant 0 : index
      %c0_48 = arith.constant 0 : index
      %c0_49 = arith.constant 0 : index
      %38 = vector.load %arg1[%c6, %c0_46, %c0_47, %c0_48, %c0_49] : memref<8x4x4x4x4xf32, #tpu.memory_space<vmem>>, vector<1x4x4x4x4xf32>
      %39 = vector.shape_cast %38 : vector<1x4x4x4x4xf32> to vector<4x4x4x4xf32>
      %c7 = arith.constant 7 : index
      %c0_50 = arith.constant 0 : index
      %c0_51 = arith.constant 0 : index
      %c0_52 = arith.constant 0 : index
      %c0_53 = arith.constant 0 : index
      %40 = vector.load %arg1[%c7, %c0_50, %c0_51, %c0_52, %c0_53] : memref<8x4x4x4x4xf32, #tpu.memory_space<vmem>>, vector<1x4x4x4x4xf32>
      %41 = vector.shape_cast %40 : vector<1x4x4x4x4xf32> to vector<4x4x4x4xf32>
      %42 = tpu.iota {dimensions = array<i32: 1>} : vector<4x4x4xi32>
      %43 = arith.sitofp %42 : vector<4x4x4xi32> to vector<4x4x4xf32>
      %cst_54 = arith.constant 2.500000e-01 : f32
      %44 = vector.broadcast %cst_54 : f32 to vector<4x4x4xf32>
      %45 = arith.mulf %43, %44 : vector<4x4x4xf32>
      %46 = vector.extract_strided_slice %27 {offsets = [0, 0, 0, 0], sizes = [4, 1, 4, 4], strides = [1, 1, 1, 1]} : vector<4x4x4x4xf32> to vector<4x1x4x4xf32>
      %47 = vector.shape_cast %46 : vector<4x1x4x4xf32> to vector<4x4x4xf32>
      %48 = arith.addf %47, %45 : vector<4x4x4xf32>
      %49 = vector.extract_strided_slice %27 {offsets = [0, 1, 0, 0], sizes = [4, 1, 4, 4], strides = [1, 1, 1, 1]} : vector<4x4x4x4xf32> to vector<4x1x4x4xf32>
      %50 = vector.shape_cast %49 : vector<4x1x4x4xf32> to vector<4x4x4xf32>
      %51 = arith.addf %50, %45 : vector<4x4x4xf32>
      %52 = vector.extract_strided_slice %27 {offsets = [0, 2, 0, 0], sizes = [4, 1, 4, 4], strides = [1, 1, 1, 1]} : vector<4x4x4x4xf32> to vector<4x1x4x4xf32>
      %53 = vector.shape_cast %52 : vector<4x1x4x4xf32> to vector<4x4x4xf32>
      %54 = arith.addf %53, %45 : vector<4x4x4xf32>
      %55 = vector.extract_strided_slice %27 {offsets = [0, 3, 0, 0], sizes = [4, 1, 4, 4], strides = [1, 1, 1, 1]} : vector<4x4x4x4xf32> to vector<4x1x4x4xf32>
      %56 = vector.shape_cast %55 : vector<4x1x4x4xf32> to vector<4x4x4xf32>
      %57 = arith.addf %56, %45 : vector<4x4x4xf32>
      %58 = vector.extract_strided_slice %35 {offsets = [0, 0, 0, 0], sizes = [4, 1, 4, 4], strides = [1, 1, 1, 1]} : vector<4x4x4x4xf32> to vector<4x1x4x4xf32>
      %59 = vector.shape_cast %58 : vector<4x1x4x4xf32> to vector<4x4x4xf32>
      %60 = arith.addf %59, %45 : vector<4x4x4xf32>
      %61 = vector.extract_strided_slice %35 {offsets = [0, 1, 0, 0], sizes = [4, 1, 4, 4], strides = [1, 1, 1, 1]} : vector<4x4x4x4xf32> to vector<4x1x4x4xf32>
      %62 = vector.shape_cast %61 : vector<4x1x4x4xf32> to vector<4x4x4xf32>
      %63 = arith.addf %62, %45 : vector<4x4x4xf32>
      %64 = vector.extract_strided_slice %35 {offsets = [0, 2, 0, 0], sizes = [4, 1, 4, 4], strides = [1, 1, 1, 1]} : vector<4x4x4x4xf32> to vector<4x1x4x4xf32>
      %65 = vector.shape_cast %64 : vector<4x1x4x4xf32> to vector<4x4x4xf32>
      %66 = arith.addf %65, %45 : vector<4x4x4xf32>
      %67 = vector.extract_strided_slice %35 {offsets = [0, 3, 0, 0], sizes = [4, 1, 4, 4], strides = [1, 1, 1, 1]} : vector<4x4x4x4xf32> to vector<4x1x4x4xf32>
      %68 = vector.shape_cast %67 : vector<4x1x4x4xf32> to vector<4x4x4xf32>
      %69 = arith.addf %68, %45 : vector<4x4x4xf32>
      %cst_55 = arith.constant 5.000000e-01 : f32
      %70 = vector.broadcast %cst_55 : f32 to vector<4x4x4xf32>
      %71 = arith.mulf %54, %70 : vector<4x4x4xf32>
      %72 = arith.subf %48, %71 : vector<4x4x4xf32>
      %cst_56 = arith.constant 5.000000e-01 : f32
      %73 = vector.broadcast %cst_56 : f32 to vector<4x4x4xf32>
      %74 = arith.mulf %66, %73 : vector<4x4x4xf32>
      %75 = arith.subf %60, %74 : vector<4x4x4xf32>
      %76 = arith.maximumf %72, %75 : vector<4x4x4xf32>
      %cst_57 = arith.constant 5.000000e-01 : f32
      %77 = vector.broadcast %cst_57 : f32 to vector<4x4x4xf32>
      %78 = arith.mulf %57, %77 : vector<4x4x4xf32>
      %79 = arith.subf %51, %78 : vector<4x4x4xf32>
      %cst_58 = arith.constant 5.000000e-01 : f32
      %80 = vector.broadcast %cst_58 : f32 to vector<4x4x4xf32>
      %81 = arith.mulf %69, %80 : vector<4x4x4xf32>
      %82 = arith.subf %63, %81 : vector<4x4x4xf32>
      %83 = arith.maximumf %79, %82 : vector<4x4x4xf32>
      %cst_59 = arith.constant 5.000000e-01 : f32
      %84 = vector.broadcast %cst_59 : f32 to vector<4x4x4xf32>
      %85 = arith.mulf %54, %84 : vector<4x4x4xf32>
      %86 = arith.addf %48, %85 : vector<4x4x4xf32>
      %cst_60 = arith.constant 5.000000e-01 : f32
      %87 = vector.broadcast %cst_60 : f32 to vector<4x4x4xf32>
      %88 = arith.mulf %66, %87 : vector<4x4x4xf32>
      %89 = arith.addf %60, %88 : vector<4x4x4xf32>
      %90 = arith.minimumf %86, %89 : vector<4x4x4xf32>
      %cst_61 = arith.constant 5.000000e-01 : f32
      %91 = vector.broadcast %cst_61 : f32 to vector<4x4x4xf32>
      %92 = arith.mulf %57, %91 : vector<4x4x4xf32>
      %93 = arith.addf %51, %92 : vector<4x4x4xf32>
      %cst_62 = arith.constant 5.000000e-01 : f32
      %94 = vector.broadcast %cst_62 : f32 to vector<4x4x4xf32>
      %95 = arith.mulf %69, %94 : vector<4x4x4xf32>
      %96 = arith.addf %63, %95 : vector<4x4x4xf32>
      %97 = arith.minimumf %93, %96 : vector<4x4x4xf32>
      %98 = arith.subf %90, %76 : vector<4x4x4xf32>
      %cst_63 = arith.constant 0.000000e+00 : f32
      %99 = vector.broadcast %cst_63 : f32 to vector<4x4x4xf32>
      %100 = arith.maximumf %98, %99 : vector<4x4x4xf32>
      %101 = arith.subf %97, %83 : vector<4x4x4xf32>
      %cst_64 = arith.constant 0.000000e+00 : f32
      %102 = vector.broadcast %cst_64 : f32 to vector<4x4x4xf32>
      %103 = arith.maximumf %101, %102 : vector<4x4x4xf32>
      %104 = arith.mulf %100, %103 : vector<4x4x4xf32>
      %105 = arith.mulf %54, %57 : vector<4x4x4xf32>
      %106 = arith.mulf %66, %69 : vector<4x4x4xf32>
      %107 = arith.addf %105, %106 : vector<4x4x4xf32>
      %108 = arith.subf %107, %104 : vector<4x4x4xf32>
      %109 = arith.divf %104, %108 : vector<4x4x4xf32>
      %cst_65 = arith.constant 9.99999997E-7 : f32
      %110 = vector.broadcast %cst_65 : f32 to vector<4x4x4xf32>
      %111 = arith.addf %109, %110 : vector<4x4x4xf32>
      %112 = vector.extract_strided_slice %29 {offsets = [0, 0, 0, 0], sizes = [4, 1, 4, 4], strides = [1, 1, 1, 1]} : vector<4x4x4x4xf32> to vector<4x1x4x4xf32>
      %113 = vector.shape_cast %112 : vector<4x1x4x4xf32> to vector<4x4x4xf32>
      %cst_66 = arith.constant 0.000000e+00 : f32
      %114 = vector.broadcast %cst_66 : f32 to vector<4x4x4xf32>
      %115 = arith.addf %113, %114 : vector<4x4x4xf32>
      %116 = vector.extract_strided_slice %29 {offsets = [0, 1, 0, 0], sizes = [4, 1, 4, 4], strides = [1, 1, 1, 1]} : vector<4x4x4x4xf32> to vector<4x1x4x4xf32>
      %117 = vector.shape_cast %116 : vector<4x1x4x4xf32> to vector<4x4x4xf32>
      %cst_67 = arith.constant 2.500000e-01 : f32
      %118 = vector.broadcast %cst_67 : f32 to vector<4x4x4xf32>
      %119 = arith.addf %117, %118 : vector<4x4x4xf32>
      %120 = vector.extract_strided_slice %29 {offsets = [0, 2, 0, 0], sizes = [4, 1, 4, 4], strides = [1, 1, 1, 1]} : vector<4x4x4x4xf32> to vector<4x1x4x4xf32>
      %121 = vector.shape_cast %120 : vector<4x1x4x4xf32> to vector<4x4x4xf32>
      %cst_68 = arith.constant 5.000000e-01 : f32
      %122 = vector.broadcast %cst_68 : f32 to vector<4x4x4xf32>
      %123 = arith.addf %121, %122 : vector<4x4x4xf32>
      %124 = vector.extract_strided_slice %29 {offsets = [0, 3, 0, 0], sizes = [4, 1, 4, 4], strides = [1, 1, 1, 1]} : vector<4x4x4x4xf32> to vector<4x1x4x4xf32>
      %125 = vector.shape_cast %124 : vector<4x1x4x4xf32> to vector<4x4x4xf32>
      %cst_69 = arith.constant 7.500000e-01 : f32
      %126 = vector.broadcast %cst_69 : f32 to vector<4x4x4xf32>
      %127 = arith.addf %125, %126 : vector<4x4x4xf32>
      %128 = vector.extract_strided_slice %37 {offsets = [0, 0, 0, 0], sizes = [4, 1, 4, 4], strides = [1, 1, 1, 1]} : vector<4x4x4x4xf32> to vector<4x1x4x4xf32>
      %129 = vector.shape_cast %128 : vector<4x1x4x4xf32> to vector<4x4x4xf32>
      %cst_70 = arith.constant 0.000000e+00 : f32
      %130 = vector.broadcast %cst_70 : f32 to vector<4x4x4xf32>
      %131 = arith.addf %129, %130 : vector<4x4x4xf32>
      %132 = vector.extract_strided_slice %37 {offsets = [0, 1, 0, 0], sizes = [4, 1, 4, 4], strides = [1, 1, 1, 1]} : vector<4x4x4x4xf32> to vector<4x1x4x4xf32>
      %133 = vector.shape_cast %132 : vector<4x1x4x4xf32> to vector<4x4x4xf32>
      %cst_71 = arith.constant 2.500000e-01 : f32
      %134 = vector.broadcast %cst_71 : f32 to vector<4x4x4xf32>
      %135 = arith.addf %133, %134 : vector<4x4x4xf32>
      %136 = vector.extract_strided_slice %37 {offsets = [0, 2, 0, 0], sizes = [4, 1, 4, 4], strides = [1, 1, 1, 1]} : vector<4x4x4x4xf32> to vector<4x1x4x4xf32>
      %137 = vector.shape_cast %136 : vector<4x1x4x4xf32> to vector<4x4x4xf32>
      %cst_72 = arith.constant 5.000000e-01 : f32
      %138 = vector.broadcast %cst_72 : f32 to vector<4x4x4xf32>
      %139 = arith.addf %137, %138 : vector<4x4x4xf32>
      %140 = vector.extract_strided_slice %37 {offsets = [0, 3, 0, 0], sizes = [4, 1, 4, 4], strides = [1, 1, 1, 1]} : vector<4x4x4x4xf32> to vector<4x1x4x4xf32>
      %141 = vector.shape_cast %140 : vector<4x1x4x4xf32> to vector<4x4x4xf32>
      %cst_73 = arith.constant 7.500000e-01 : f32
      %142 = vector.broadcast %cst_73 : f32 to vector<4x4x4xf32>
      %143 = arith.addf %141, %142 : vector<4x4x4xf32>
      %cst_74 = arith.constant 5.000000e-01 : f32
      %144 = vector.broadcast %cst_74 : f32 to vector<4x4x4xf32>
      %145 = arith.mulf %123, %144 : vector<4x4x4xf32>
      %146 = arith.subf %115, %145 : vector<4x4x4xf32>
      %cst_75 = arith.constant 5.000000e-01 : f32
      %147 = vector.broadcast %cst_75 : f32 to vector<4x4x4xf32>
      %148 = arith.mulf %139, %147 : vector<4x4x4xf32>
      %149 = arith.subf %131, %148 : vector<4x4x4xf32>
      %150 = arith.maximumf %146, %149 : vector<4x4x4xf32>
      %cst_76 = arith.constant 5.000000e-01 : f32
      %151 = vector.broadcast %cst_76 : f32 to vector<4x4x4xf32>
      %152 = arith.mulf %127, %151 : vector<4x4x4xf32>
      %153 = arith.subf %119, %152 : vector<4x4x4xf32>
      %cst_77 = arith.constant 5.000000e-01 : f32
      %154 = vector.broadcast %cst_77 : f32 to vector<4x4x4xf32>
      %155 = arith.mulf %143, %154 : vector<4x4x4xf32>
      %156 = arith.subf %135, %155 : vector<4x4x4xf32>
      %157 = arith.maximumf %153, %156 : vector<4x4x4xf32>
      %cst_78 = arith.constant 5.000000e-01 : f32
      %158 = vector.broadcast %cst_78 : f32 to vector<4x4x4xf32>
      %159 = arith.mulf %123, %158 : vector<4x4x4xf32>
      %160 = arith.addf %115, %159 : vector<4x4x4xf32>
      %cst_79 = arith.constant 5.000000e-01 : f32
      %161 = vector.broadcast %cst_79 : f32 to vector<4x4x4xf32>
      %162 = arith.mulf %139, %161 : vector<4x4x4xf32>
      %163 = arith.addf %131, %162 : vector<4x4x4xf32>
      %164 = arith.minimumf %160, %163 : vector<4x4x4xf32>
      %cst_80 = arith.constant 5.000000e-01 : f32
      %165 = vector.broadcast %cst_80 : f32 to vector<4x4x4xf32>
      %166 = arith.mulf %127, %165 : vector<4x4x4xf32>
      %167 = arith.addf %119, %166 : vector<4x4x4xf32>
      %cst_81 = arith.constant 5.000000e-01 : f32
      %168 = vector.broadcast %cst_81 : f32 to vector<4x4x4xf32>
      %169 = arith.mulf %143, %168 : vector<4x4x4xf32>
      %170 = arith.addf %135, %169 : vector<4x4x4xf32>
      %171 = arith.minimumf %167, %170 : vector<4x4x4xf32>
      %172 = arith.subf %164, %150 : vector<4x4x4xf32>
      %cst_82 = arith.constant 0.000000e+00 : f32
      %173 = vector.broadcast %cst_82 : f32 to vector<4x4x4xf32>
      %174 = arith.maximumf %172, %173 : vector<4x4x4xf32>
      %175 = arith.subf %171, %157 : vector<4x4x4xf32>
      %cst_83 = arith.constant 0.000000e+00 : f32
      %176 = vector.broadcast %cst_83 : f32 to vector<4x4x4xf32>
      %177 = arith.maximumf %175, %176 : vector<4x4x4xf32>
      %178 = arith.mulf %174, %177 : vector<4x4x4xf32>
      %179 = arith.mulf %123, %127 : vector<4x4x4xf32>
      %180 = arith.mulf %139, %143 : vector<4x4x4xf32>
      %181 = arith.addf %179, %180 : vector<4x4x4xf32>
      %182 = arith.subf %181, %178 : vector<4x4x4xf32>
      %183 = arith.divf %178, %182 : vector<4x4x4xf32>
      %cst_84 = arith.constant 9.99999997E-7 : f32
      %184 = vector.broadcast %cst_84 : f32 to vector<4x4x4xf32>
      %185 = arith.addf %183, %184 : vector<4x4x4xf32>
      %186 = vector.extract_strided_slice %31 {offsets = [0, 0, 0, 0], sizes = [4, 1, 4, 4], strides = [1, 1, 1, 1]} : vector<4x4x4x4xf32> to vector<4x1x4x4xf32>
      %187 = vector.shape_cast %186 : vector<4x1x4x4xf32> to vector<4x4x4xf32>
      %188 = arith.mulf %187, %187 : vector<4x4x4xf32>
      %189 = vector.extract_strided_slice %31 {offsets = [0, 1, 0, 0], sizes = [4, 1, 4, 4], strides = [1, 1, 1, 1]} : vector<4x4x4x4xf32> to vector<4x1x4x4xf32>
      %190 = vector.shape_cast %189 : vector<4x1x4x4xf32> to vector<4x4x4xf32>
      %191 = arith.mulf %190, %190 : vector<4x4x4xf32>
      %192 = vector.extract_strided_slice %31 {offsets = [0, 2, 0, 0], sizes = [4, 1, 4, 4], strides = [1, 1, 1, 1]} : vector<4x4x4x4xf32> to vector<4x1x4x4xf32>
      %193 = vector.shape_cast %192 : vector<4x1x4x4xf32> to vector<4x4x4xf32>
      %194 = arith.mulf %193, %193 : vector<4x4x4xf32>
      %195 = vector.extract_strided_slice %31 {offsets = [0, 3, 0, 0], sizes = [4, 1, 4, 4], strides = [1, 1, 1, 1]} : vector<4x4x4x4xf32> to vector<4x1x4x4xf32>
      %196 = vector.shape_cast %195 : vector<4x1x4x4xf32> to vector<4x4x4xf32>
      %197 = arith.mulf %196, %196 : vector<4x4x4xf32>
      %198 = vector.extract_strided_slice %39 {offsets = [0, 0, 0, 0], sizes = [4, 1, 4, 4], strides = [1, 1, 1, 1]} : vector<4x4x4x4xf32> to vector<4x1x4x4xf32>
      %199 = vector.shape_cast %198 : vector<4x1x4x4xf32> to vector<4x4x4xf32>
      %200 = arith.mulf %199, %199 : vector<4x4x4xf32>
      %201 = vector.extract_strided_slice %39 {offsets = [0, 1, 0, 0], sizes = [4, 1, 4, 4], strides = [1, 1, 1, 1]} : vector<4x4x4x4xf32> to vector<4x1x4x4xf32>
      %202 = vector.shape_cast %201 : vector<4x1x4x4xf32> to vector<4x4x4xf32>
      %203 = arith.mulf %202, %202 : vector<4x4x4xf32>
      %204 = vector.extract_strided_slice %39 {offsets = [0, 2, 0, 0], sizes = [4, 1, 4, 4], strides = [1, 1, 1, 1]} : vector<4x4x4x4xf32> to vector<4x1x4x4xf32>
      %205 = vector.shape_cast %204 : vector<4x1x4x4xf32> to vector<4x4x4xf32>
      %206 = arith.mulf %205, %205 : vector<4x4x4xf32>
      %207 = vector.extract_strided_slice %39 {offsets = [0, 3, 0, 0], sizes = [4, 1, 4, 4], strides = [1, 1, 1, 1]} : vector<4x4x4x4xf32> to vector<4x1x4x4xf32>
      %208 = vector.shape_cast %207 : vector<4x1x4x4xf32> to vector<4x4x4xf32>
      %209 = arith.mulf %208, %208 : vector<4x4x4xf32>
      %cst_85 = arith.constant 5.000000e-01 : f32
      %210 = vector.broadcast %cst_85 : f32 to vector<4x4x4xf32>
      %211 = arith.mulf %194, %210 : vector<4x4x4xf32>
      %212 = arith.subf %188, %211 : vector<4x4x4xf32>
      %cst_86 = arith.constant 5.000000e-01 : f32
      %213 = vector.broadcast %cst_86 : f32 to vector<4x4x4xf32>
      %214 = arith.mulf %206, %213 : vector<4x4x4xf32>
      %215 = arith.subf %200, %214 : vector<4x4x4xf32>
      %216 = arith.maximumf %212, %215 : vector<4x4x4xf32>
      %cst_87 = arith.constant 5.000000e-01 : f32
      %217 = vector.broadcast %cst_87 : f32 to vector<4x4x4xf32>
      %218 = arith.mulf %197, %217 : vector<4x4x4xf32>
      %219 = arith.subf %191, %218 : vector<4x4x4xf32>
      %cst_88 = arith.constant 5.000000e-01 : f32
      %220 = vector.broadcast %cst_88 : f32 to vector<4x4x4xf32>
      %221 = arith.mulf %209, %220 : vector<4x4x4xf32>
      %222 = arith.subf %203, %221 : vector<4x4x4xf32>
      %223 = arith.maximumf %219, %222 : vector<4x4x4xf32>
      %cst_89 = arith.constant 5.000000e-01 : f32
      %224 = vector.broadcast %cst_89 : f32 to vector<4x4x4xf32>
      %225 = arith.mulf %194, %224 : vector<4x4x4xf32>
      %226 = arith.addf %188, %225 : vector<4x4x4xf32>
      %cst_90 = arith.constant 5.000000e-01 : f32
      %227 = vector.broadcast %cst_90 : f32 to vector<4x4x4xf32>
      %228 = arith.mulf %206, %227 : vector<4x4x4xf32>
      %229 = arith.addf %200, %228 : vector<4x4x4xf32>
      %230 = arith.minimumf %226, %229 : vector<4x4x4xf32>
      %cst_91 = arith.constant 5.000000e-01 : f32
      %231 = vector.broadcast %cst_91 : f32 to vector<4x4x4xf32>
      %232 = arith.mulf %197, %231 : vector<4x4x4xf32>
      %233 = arith.addf %191, %232 : vector<4x4x4xf32>
      %cst_92 = arith.constant 5.000000e-01 : f32
      %234 = vector.broadcast %cst_92 : f32 to vector<4x4x4xf32>
      %235 = arith.mulf %209, %234 : vector<4x4x4xf32>
      %236 = arith.addf %203, %235 : vector<4x4x4xf32>
      %237 = arith.minimumf %233, %236 : vector<4x4x4xf32>
      %238 = arith.subf %230, %216 : vector<4x4x4xf32>
      %cst_93 = arith.constant 0.000000e+00 : f32
      %239 = vector.broadcast %cst_93 : f32 to vector<4x4x4xf32>
      %240 = arith.maximumf %238, %239 : vector<4x4x4xf32>
      %241 = arith.subf %237, %223 : vector<4x4x4xf32>
      %cst_94 = arith.constant 0.000000e+00 : f32
      %242 = vector.broadcast %cst_94 : f32 to vector<4x4x4xf32>
      %243 = arith.maximumf %241, %242 : vector<4x4x4xf32>
      %244 = arith.mulf %240, %243 : vector<4x4x4xf32>
      %245 = arith.mulf %194, %197 : vector<4x4x4xf32>
      %246 = arith.mulf %206, %209 : vector<4x4x4xf32>
      %247 = arith.addf %245, %246 : vector<4x4x4xf32>
      %248 = arith.subf %247, %244 : vector<4x4x4xf32>
      %249 = arith.divf %244, %248 : vector<4x4x4xf32>
      %cst_95 = arith.constant 9.99999997E-7 : f32
      %250 = vector.broadcast %cst_95 : f32 to vector<4x4x4xf32>
      %251 = arith.addf %249, %250 : vector<4x4x4xf32>
      %252 = vector.extract_strided_slice %33 {offsets = [0, 0, 0, 0], sizes = [4, 1, 4, 4], strides = [1, 1, 1, 1]} : vector<4x4x4x4xf32> to vector<4x1x4x4xf32>
      %253 = vector.shape_cast %252 : vector<4x1x4x4xf32> to vector<4x4x4xf32>
      %254 = arith.mulf %253, %253 : vector<4x4x4xf32>
      %255 = vector.extract_strided_slice %33 {offsets = [0, 1, 0, 0], sizes = [4, 1, 4, 4], strides = [1, 1, 1, 1]} : vector<4x4x4x4xf32> to vector<4x1x4x4xf32>
      %256 = vector.shape_cast %255 : vector<4x1x4x4xf32> to vector<4x4x4xf32>
      %257 = arith.mulf %256, %256 : vector<4x4x4xf32>
      %258 = vector.extract_strided_slice %33 {offsets = [0, 2, 0, 0], sizes = [4, 1, 4, 4], strides = [1, 1, 1, 1]} : vector<4x4x4x4xf32> to vector<4x1x4x4xf32>
      %259 = vector.shape_cast %258 : vector<4x1x4x4xf32> to vector<4x4x4xf32>
      %260 = arith.mulf %259, %259 : vector<4x4x4xf32>
      %261 = vector.extract_strided_slice %33 {offsets = [0, 3, 0, 0], sizes = [4, 1, 4, 4], strides = [1, 1, 1, 1]} : vector<4x4x4x4xf32> to vector<4x1x4x4xf32>
      %262 = vector.shape_cast %261 : vector<4x1x4x4xf32> to vector<4x4x4xf32>
      %263 = arith.mulf %262, %262 : vector<4x4x4xf32>
      %264 = vector.extract_strided_slice %41 {offsets = [0, 0, 0, 0], sizes = [4, 1, 4, 4], strides = [1, 1, 1, 1]} : vector<4x4x4x4xf32> to vector<4x1x4x4xf32>
      %265 = vector.shape_cast %264 : vector<4x1x4x4xf32> to vector<4x4x4xf32>
      %266 = arith.mulf %265, %265 : vector<4x4x4xf32>
      %267 = vector.extract_strided_slice %41 {offsets = [0, 1, 0, 0], sizes = [4, 1, 4, 4], strides = [1, 1, 1, 1]} : vector<4x4x4x4xf32> to vector<4x1x4x4xf32>
      %268 = vector.shape_cast %267 : vector<4x1x4x4xf32> to vector<4x4x4xf32>
      %269 = arith.mulf %268, %268 : vector<4x4x4xf32>
      %270 = vector.extract_strided_slice %41 {offsets = [0, 2, 0, 0], sizes = [4, 1, 4, 4], strides = [1, 1, 1, 1]} : vector<4x4x4x4xf32> to vector<4x1x4x4xf32>
      %271 = vector.shape_cast %270 : vector<4x1x4x4xf32> to vector<4x4x4xf32>
      %272 = arith.mulf %271, %271 : vector<4x4x4xf32>
      %273 = vector.extract_strided_slice %41 {offsets = [0, 3, 0, 0], sizes = [4, 1, 4, 4], strides = [1, 1, 1, 1]} : vector<4x4x4x4xf32> to vector<4x1x4x4xf32>
      %274 = vector.shape_cast %273 : vector<4x1x4x4xf32> to vector<4x4x4xf32>
      %275 = arith.mulf %274, %274 : vector<4x4x4xf32>
      %cst_96 = arith.constant 5.000000e-01 : f32
      %276 = vector.broadcast %cst_96 : f32 to vector<4x4x4xf32>
      %277 = arith.mulf %260, %276 : vector<4x4x4xf32>
      %278 = arith.subf %254, %277 : vector<4x4x4xf32>
      %cst_97 = arith.constant 5.000000e-01 : f32
      %279 = vector.broadcast %cst_97 : f32 to vector<4x4x4xf32>
      %280 = arith.mulf %272, %279 : vector<4x4x4xf32>
      %281 = arith.subf %266, %280 : vector<4x4x4xf32>
      %282 = arith.maximumf %278, %281 : vector<4x4x4xf32>
      %cst_98 = arith.constant 5.000000e-01 : f32
      %283 = vector.broadcast %cst_98 : f32 to vector<4x4x4xf32>
      %284 = arith.mulf %263, %283 : vector<4x4x4xf32>
      %285 = arith.subf %257, %284 : vector<4x4x4xf32>
      %cst_99 = arith.constant 5.000000e-01 : f32
      %286 = vector.broadcast %cst_99 : f32 to vector<4x4x4xf32>
      %287 = arith.mulf %275, %286 : vector<4x4x4xf32>
      %288 = arith.subf %269, %287 : vector<4x4x4xf32>
      %289 = arith.maximumf %285, %288 : vector<4x4x4xf32>
      %cst_100 = arith.constant 5.000000e-01 : f32
      %290 = vector.broadcast %cst_100 : f32 to vector<4x4x4xf32>
      %291 = arith.mulf %260, %290 : vector<4x4x4xf32>
      %292 = arith.addf %254, %291 : vector<4x4x4xf32>
      %cst_101 = arith.constant 5.000000e-01 : f32
      %293 = vector.broadcast %cst_101 : f32 to vector<4x4x4xf32>
      %294 = arith.mulf %272, %293 : vector<4x4x4xf32>
      %295 = arith.addf %266, %294 : vector<4x4x4xf32>
      %296 = arith.minimumf %292, %295 : vector<4x4x4xf32>
      %cst_102 = arith.constant 5.000000e-01 : f32
      %297 = vector.broadcast %cst_102 : f32 to vector<4x4x4xf32>
      %298 = arith.mulf %263, %297 : vector<4x4x4xf32>
      %299 = arith.addf %257, %298 : vector<4x4x4xf32>
      %cst_103 = arith.constant 5.000000e-01 : f32
      %300 = vector.broadcast %cst_103 : f32 to vector<4x4x4xf32>
      %301 = arith.mulf %275, %300 : vector<4x4x4xf32>
      %302 = arith.addf %269, %301 : vector<4x4x4xf32>
      %303 = arith.minimumf %299, %302 : vector<4x4x4xf32>
      %304 = arith.subf %296, %282 : vector<4x4x4xf32>
      %cst_104 = arith.constant 0.000000e+00 : f32
      %305 = vector.broadcast %cst_104 : f32 to vector<4x4x4xf32>
      %306 = arith.maximumf %304, %305 : vector<4x4x4xf32>
      %307 = arith.subf %303, %289 : vector<4x4x4xf32>
      %cst_105 = arith.constant 0.000000e+00 : f32
      %308 = vector.broadcast %cst_105 : f32 to vector<4x4x4xf32>
      %309 = arith.maximumf %307, %308 : vector<4x4x4xf32>
      %310 = arith.mulf %306, %309 : vector<4x4x4xf32>
      %311 = arith.mulf %260, %263 : vector<4x4x4xf32>
      %312 = arith.mulf %272, %275 : vector<4x4x4xf32>
      %313 = arith.addf %311, %312 : vector<4x4x4xf32>
      %314 = arith.subf %313, %310 : vector<4x4x4xf32>
      %315 = arith.divf %310, %314 : vector<4x4x4xf32>
      %cst_106 = arith.constant 9.99999997E-7 : f32
      %316 = vector.broadcast %cst_106 : f32 to vector<4x4x4xf32>
      %317 = arith.addf %315, %316 : vector<4x4x4xf32>
      %cst_107 = arith.constant dense<0xFF800000> : vector<4x4xf32>
      %318 = vector.multi_reduction <maximumf>, %111, %cst_107 [2] : vector<4x4x4xf32> to vector<4x4xf32>
      %319 = vector.shape_cast %318 : vector<4x4xf32> to vector<4x4x1xf32>
      %cst_108 = arith.constant dense<0xFF800000> : vector<4x4xf32>
      %320 = vector.multi_reduction <maximumf>, %185, %cst_108 [2] : vector<4x4x4xf32> to vector<4x4xf32>
      %321 = vector.shape_cast %320 : vector<4x4xf32> to vector<4x4x1xf32>
      %322 = arith.maximumf %319, %321 : vector<4x4x1xf32>
      %cst_109 = arith.constant dense<0xFF800000> : vector<4x4xf32>
      %323 = vector.multi_reduction <maximumf>, %251, %cst_109 [2] : vector<4x4x4xf32> to vector<4x4xf32>
      %324 = vector.shape_cast %323 : vector<4x4xf32> to vector<4x4x1xf32>
      %325 = arith.maximumf %322, %324 : vector<4x4x1xf32>
      %cst_110 = arith.constant dense<0xFF800000> : vector<4x4xf32>
      %326 = vector.multi_reduction <maximumf>, %317, %cst_110 [2] : vector<4x4x4xf32> to vector<4x4xf32>
      %327 = vector.shape_cast %326 : vector<4x4xf32> to vector<4x4x1xf32>
      %328 = arith.maximumf %325, %327 : vector<4x4x1xf32>
      %329 = tpu.iota {dimensions = array<i32: 2>} : vector<4x4x4xi32>
      %330 = vector.broadcast %328 : vector<4x4x1xf32> to vector<4x4x4xf32>
      %331 = arith.cmpf oeq, %111, %330 : vector<4x4x4xf32>
      %c4_i32 = arith.constant 4 : i32
      %332 = vector.broadcast %c4_i32 : i32 to vector<4x4x4xi32>
      %333 = arith.select %331, %329, %332 : vector<4x4x4xi1>, vector<4x4x4xi32>
      %cst_111 = arith.constant dense<2147483647> : vector<4x4xi32>
      %334 = vector.multi_reduction <minsi>, %333, %cst_111 [2] : vector<4x4x4xi32> to vector<4x4xi32>
      %335 = vector.shape_cast %334 : vector<4x4xi32> to vector<4x4x1xi32>
      %336 = vector.broadcast %335 : vector<4x4x1xi32> to vector<4x4x4xi32>
      %337 = arith.cmpi eq, %329, %336 : vector<4x4x4xi32>
      %338 = arith.extui %337 : vector<4x4x4xi1> to vector<4x4x4xi32>
      %339 = arith.sitofp %338 : vector<4x4x4xi32> to vector<4x4x4xf32>
      %c0_112 = arith.constant 0 : index
      %c0_113 = arith.constant 0 : index
      %c0_114 = arith.constant 0 : index
      %c0_115 = arith.constant 0 : index
      %340 = vector.load %arg6[%c0_112, %c0_113, %c0_114, %c0_115] : memref<1x4x4x1xf32, #tpu.memory_space<vmem>>, vector<1x4x4x1xf32>
      %341 = vector.shape_cast %340 : vector<1x4x4x1xf32> to vector<4x4x1xf32>
      %342 = vector.broadcast %341 : vector<4x4x1xf32> to vector<4x4x4xf32>
      %343 = arith.mulf %342, %339 : vector<4x4x4xf32>
      %344 = arith.subf %27, %35 : vector<4x4x4x4xf32>
      %345 = arith.mulf %344, %344 : vector<4x4x4x4xf32>
      %cst_116 = arith.constant dense<0.000000e+00> : vector<4x4x4xf32>
      %346 = vector.multi_reduction <add>, %345, %cst_116 [3] : vector<4x4x4x4xf32> to vector<4x4x4xf32>
      %347 = tpu.iota {dimensions = array<i32: 1>} : vector<4x4x4xi32>
      %348 = arith.sitofp %347 : vector<4x4x4xi32> to vector<4x4x4xf32>
      %cst_117 = arith.constant 2.500000e-01 : f32
      %349 = vector.broadcast %cst_117 : f32 to vector<4x4x4xf32>
      %350 = arith.mulf %348, %349 : vector<4x4x4xf32>
      %351 = vector.extract_strided_slice %29 {offsets = [0, 0, 0, 0], sizes = [4, 4, 4, 1], strides = [1, 1, 1, 1]} : vector<4x4x4x4xf32> to vector<4x4x4x1xf32>
      %352 = vector.shape_cast %351 : vector<4x4x4x1xf32> to vector<4x4x4xf32>
      %353 = arith.addf %352, %350 : vector<4x4x4xf32>
      %354 = vector.broadcast %328 : vector<4x4x1xf32> to vector<4x4x4xf32>
      %355 = arith.subf %353, %354 : vector<4x4x4xf32>
      %356 = arith.mulf %355, %355 : vector<4x4x4xf32>
      %357 = arith.mulf %343, %356 : vector<4x4x4xf32>
      %cst_118 = arith.constant 4.000000e+00 : f32
      %358 = vector.broadcast %cst_118 : f32 to vector<4x4x4xf32>
      %359 = arith.subf %358, %343 : vector<4x4x4xf32>
      %360 = arith.mulf %353, %353 : vector<4x4x4xf32>
      %361 = arith.mulf %359, %360 : vector<4x4x4xf32>
      %362 = arith.mulf %343, %346 : vector<4x4x4xf32>
      %cst_119 = arith.constant 5.000000e+00 : f32
      %363 = vector.broadcast %cst_119 : f32 to vector<4x4x4xf32>
      %364 = arith.mulf %363, %362 : vector<4x4x4xf32>
      %365 = arith.addf %364, %357 : vector<4x4x4xf32>
      %cst_120 = arith.constant 5.000000e-01 : f32
      %366 = vector.broadcast %cst_120 : f32 to vector<4x4x4xf32>
      %367 = arith.mulf %366, %361 : vector<4x4x4xf32>
      %368 = arith.addf %365, %367 : vector<4x4x4xf32>
      %369 = vector.shape_cast %368 : vector<4x4x4xf32> to vector<1x4x4x4xf32>
      %cst_121 = arith.constant dense<0.000000e+00> : vector<1xf32>
      %370 = vector.multi_reduction <add>, %369, %cst_121 [1, 2, 3] : vector<1x4x4x4xf32> to vector<1xf32>
      %371 = vector.shape_cast %370 : vector<1xf32> to vector<1x1x1x1xf32>
      %372 = vector.extract %371[0, 0, 0, 0] : f32 from vector<1x1x1x1xf32>
      %c0_122 = arith.constant 0 : index
      %c0_123 = arith.constant 0 : index
      %373 = vector.load %arg5[%c0_122, %c0_123] : memref<1x1xf32, #tpu.memory_space<vmem>>, vector<1x1xf32>
      %374 = vector.broadcast %372 : f32 to vector<1x1xf32>
      %375 = arith.addf %373, %374 : vector<1x1xf32>
      %cst_124 = arith.constant 2.500000e-01 : f32
      %376 = vector.broadcast %cst_124 : f32 to vector<1x1xf32>
      %377 = arith.mulf %375, %376 : vector<1x1xf32>
      %c0_125 = arith.constant 0 : index
      %c0_126 = arith.constant 0 : index
      %378 = vector.load %arg4[%c0_125, %c0_126] : memref<1x1xf32, #tpu.memory_space<vmem>>, vector<1x1xf32>
      tpu.vector_store %arg4[%c0_125, %c0_126], %377 {strides = array<i32>} : memref<1x1xf32, #tpu.memory_space<vmem>>, vector<1x1xf32>,
    } else {
    }
    return
  }
  func.func @transform_0(%arg0: i32) -> (i32, i32, i32, i32, i32) {
    %c0_i32 = arith.constant 0 : i32
    %c0_i32_0 = arith.constant 0 : i32
    %c0_i32_1 = arith.constant 0 : i32
    %c0_i32_2 = arith.constant 0 : i32
    %c0_i32_3 = arith.constant 0 : i32
    %c0_i32_4 = arith.constant 0 : i32
    return %c0_i32, %c0_i32_0, %c0_i32_1, %c0_i32_2, %c0_i32_3 : i32, i32, i32, i32, i32
  }
  func.func @transform_1(%arg0: i32) -> (i32, i32, i32, i32) {
    %c0_i32 = arith.constant 0 : i32
    %c0_i32_0 = arith.constant 0 : i32
    %c0_i32_1 = arith.constant 0 : i32
    %c0_i32_2 = arith.constant 0 : i32
    return %arg0, %c0_i32, %c0_i32_0, %c0_i32_1 : i32, i32, i32, i32
  }
  func.func @transform_2(%arg0: i32) -> (i32, i32, i32, i32) {
    %c0_i32 = arith.constant 0 : i32
    %c0_i32_0 = arith.constant 0 : i32
    %c0_i32_1 = arith.constant 0 : i32
    %c0_i32_2 = arith.constant 0 : i32
    return %arg0, %c0_i32, %c0_i32_0, %c0_i32_1 : i32, i32, i32, i32
  }
  func.func @transform_3(%arg0: i32) -> (i32, i32) {
    %c0_i32 = arith.constant 0 : i32
    %c0_i32_0 = arith.constant 0 : i32
    %c0_i32_1 = arith.constant 0 : i32
    return %c0_i32, %c0_i32_0 : i32, i32
  }
}

</mosaic_0001>

<llo_original>
// kernel: tpu_custom_call.1
$region0: #{tpu_custom_call.1}
  #allocation0 [shape = 'u32[]', space=smem, size = 0x4, offset = 0x4, fixed_abs, tag = 'smem constant byte address 0x4 - core index']
  #allocation1 [shape = 'u32[144,128]{1,0:T(1,128)}', space=vmem, size = 0x12000, scoped, tag = 'internal scratch']
  #allocation2 [shape = 'f32[1,1]{1,0:T(1,128)}', space=vmem, size = 0x200, scoped, tag = 'scratch operand']
  #allocation3 [shape = 'f32[1,4,4,1]{3,2,1,0:T(4,128)}', space=vmem, size = 0x2000, scoped, tag = 'scratch operand']
  %s0 = inlined_call_operand.vmem [shape: f32[8,4,4,4,4], index: 0, kind: input, shape index: {}]
  %s1 = inlined_call_operand.vmem [shape: f32[4,4,4,32], index: 1, kind: input, shape index: {}]
  %s2 = inlined_call_operand.vmem [shape: f32[4,4,4,32], index: 2, kind: input, shape index: {}]
  %s3 = inlined_call_operand.hbm [shape: f32[1,1], index: 3, kind: output, shape index: {}]
  %s4 = sld [smem:[#allocation0]]
  $region53: #{tpu_custom_call.1} parent=0
    _
  %s6 = ssub.s32 1, %s4
  %s7 = scalar_select 0, %s6, %s4
  $region1: #{tpu_custom_call.1} parent=0
    #allocation4 [shape = 'u8[512]{0}', space=vmem, size = 0x400, scoped, tag = 'output window, operand 0, single buffered']
    #allocation5 [shape = 's32[2]{0}', space=sflag, size = 0x8, scoped, tag = 'scoped memory for tpu_custom_call.1']
    %8 = vsyncpa [#allocation5], 0
    loop: start=0, step=1, limit=6
    $region2: #{tpu_custom_call.1} parent=1 // loop_pre_header
      _
    $region3: #{tpu_custom_call.1} parent=1 // loop_header
      %s10 = sphi 0, %s14
      %p11 = scmp.ge.s32.totalorder %s10, 6
      %s18 = sphi 0, %s18
      %s20 = sphi 0, %s18
      %s21 = sphi 0, %s20
      %s35 = sphi 0, %s21
      %s41 = sphi 0, %s43
      %s44 = sphi 0, %s41
      %s45 = sphi 0, %s44
      %s61 = sphi 0, %s45
      %s67 = sphi 0, %s69
      %s70 = sphi 0, %s67
      %s71 = sphi 0, %s70
      %s87 = sphi 0, %s71
      %s91 = sphi 0, %s91
      %s93 = sphi 0, %s91
      %s94 = sphi 0, %s93
      %s108 = sphi 0, %s94
    $region4: #{tpu_custom_call.1} parent=1 // loop_header_branch
      %13 = sbr.rel (%p11) target = $region8
    $region5: #{tpu_custom_call.1} parent=1 // loop_body
      %s15 = ssub.s32 %s10, 1
      %s16 = ssub.s32 %s10, 2
      %s17 = sadd.s32 %s10, 1
      %s19 = sadd.s32 %s18, 1
      %p22 = scmp.eq.s32.totalorder %s10, 3
      %p23 = scmp.ne.s32.totalorder %s18, %s20
      %p24 = scmp.eq.s32.totalorder %s10, 0
      %p25 = por %p23, %p24
      %p26 = scmp.ne.s32.totalorder %s18, %s20
      %p27 = scmp.eq.s32.totalorder %s15, 3
      %p28 = por %p26, %p27
      %p29 = scmp.ne.s32.totalorder %s20, %s21
      %p30 = scmp.eq.s32.totalorder %s15, 0
      %p31 = por %p29, %p30
      %p32 = scmp.ne.s32.totalorder %s20, %s21
      %p33 = scmp.eq.s32.totalorder %s16, 3
      %p34 = por %p32, %p33
      %p36 = scmp.ne.s32.totalorder %s21, %s35
      %p37 = scmp.eq.s32.totalorder %s16, 0
      %p38 = por %p36, %p37
      %s39 = ssub.s32 %s10, %s17
      %p40 = scmp.eq.s32.totalorder %s39, 0
      %s42 = sadd.s32 %s41, 1
      %s43 = scalar_select %p40, %s41, %s42
      %p46 = pneg %p40
      %p47 = scmp.eq.s32.totalorder %s10, 3
      %p48 = por %p46, %p47
      %p49 = scmp.ne.s32.totalorder %s41, %s44
      %p50 = scmp.eq.s32.totalorder %s10, 0
      %p51 = por %p49, %p50
      %p52 = scmp.ne.s32.totalorder %s41, %s44
      %p53 = scmp.eq.s32.totalorder %s15, 3
      %p54 = por %p52, %p53
      %p55 = scmp.ne.s32.totalorder %s44, %s45
      %p56 = scmp.eq.s32.totalorder %s15, 0
      %p57 = por %p55, %p56
      %p58 = scmp.ne.s32.totalorder %s44, %s45
      %p59 = scmp.eq.s32.totalorder %s16, 3
      %p60 = por %p58, %p59
      %p62 = scmp.ne.s32.totalorder %s45, %s61
      %p63 = scmp.eq.s32.totalorder %s16, 0
      %p64 = por %p62, %p63
      %s65 = ssub.s32 %s10, %s17
      %p66 = scmp.eq.s32.totalorder %s65, 0
      %s68 = sadd.s32 %s67, 1
      %s69 = scalar_select %p66, %s67, %s68
      %p72 = pneg %p66
      %p73 = scmp.eq.s32.totalorder %s10, 3
      %p74 = por %p72, %p73
      %p75 = scmp.ne.s32.totalorder %s67, %s70
      %p76 = scmp.eq.s32.totalorder %s10, 0
      %p77 = por %p75, %p76
      %p78 = scmp.ne.s32.totalorder %s67, %s70
      %p79 = scmp.eq.s32.totalorder %s15, 3
      %p80 = por %p78, %p79
      %p81 = scmp.ne.s32.totalorder %s70, %s71
      %p82 = scmp.eq.s32.totalorder %s15, 0
      %p83 = por %p81, %p82
      %p84 = scmp.ne.s32.totalorder %s70, %s71
      %p85 = scmp.eq.s32.totalorder %s16, 3
      %p86 = por %p84, %p85
      %p88 = scmp.ne.s32.totalorder %s71, %s87
      %p89 = scmp.eq.s32.totalorder %s16, 0
      %p90 = por %p88, %p89
      %s92 = sadd.s32 %s91, 1
      %p95 = scmp.eq.s32.totalorder %s10, 3
      %p96 = scmp.ne.s32.totalorder %s91, %s93
      %p97 = scmp.eq.s32.totalorder %s10, 0
      %p98 = por %p96, %p97
      %p99 = scmp.ne.s32.totalorder %s91, %s93
      %p100 = scmp.eq.s32.totalorder %s15, 3
      %p101 = por %p99, %p100
      %p102 = scmp.ne.s32.totalorder %s93, %s94
      %p103 = scmp.eq.s32.totalorder %s15, 0
      %p104 = por %p102, %p103
      %p105 = scmp.ne.s32.totalorder %s93, %s94
      %p106 = scmp.eq.s32.totalorder %s16, 3
      %p107 = por %p105, %p106
      %p109 = scmp.ne.s32.totalorder %s94, %s108
      %p110 = scmp.eq.s32.totalorder %s16, 0
      %p111 = por %p109, %p110
      %p112 = scmp.le.s32.totalorder 1, %s10
      %p113 = scmp.lt.s32.totalorder %s10, 5
      %p114 = pnand %p112, %p113
      %p115 = pneg %p114
      // Predicated region
      $region9: #{tpu_custom_call.1} parent=5 // pred_check
        _
      $region10: #{tpu_custom_call.1} parent=5 // pred_check_branch
        %117 = sbr.rel (%p114) target = $region12
      $region11: #{tpu_custom_call.1} parent=5 // pred_region
        %s118 = ssub.s32 %s10, 1
        // Predicated region
        $region13: #{tpu_custom_call.1} parent=11 // pred_check
          %p119 = pneg %p31
        $region14: #{tpu_custom_call.1} parent=11 // pred_check_branch
          %121 = sbr.rel (%p119) target = $region16
        $region15: #{tpu_custom_call.1} parent=11 // pred_region
          _
        $region16: #{tpu_custom_call.1} parent=11 // pred_fallthru
          _
      $region12: #{tpu_custom_call.1} parent=5 // pred_fallthru
        _
      %p122 = scmp.lt.s32.totalorder %s10, 4
      // Predicated region
      $region17: #{tpu_custom_call.1} parent=5 // pred_check
        %p123 = pneg %p122
      $region18: #{tpu_custom_call.1} parent=5 // pred_check_branch
        %125 = sbr.rel (%p123) target = $region20
      $region19: #{tpu_custom_call.1} parent=5 // pred_region
        // Predicated region
        $region21: #{tpu_custom_call.1} parent=19 // pred_check
          %p126 = pneg %p51
        $region22: #{tpu_custom_call.1} parent=19 // pred_check_branch
          %128 = sbr.rel (%p126) target = $region24
        $region23: #{tpu_custom_call.1} parent=19 // pred_region
          %p129 = scmp.lt.s32.totalorder %s10, 3
          %s130 = scalar_select %p129, %s10, 3
          %s131 = smul.addr %s130, 4
          %s132 = smul.addr %s131, 4
          %s133 = scalar_lea.vmem %s1, %s132
        $region24: #{tpu_custom_call.1} parent=19 // pred_fallthru
          _
        // Predicated region
        $region25: #{tpu_custom_call.1} parent=19 // pred_check
          %p134 = pneg %p77
        $region26: #{tpu_custom_call.1} parent=19 // pred_check_branch
          %136 = sbr.rel (%p134) target = $region28
        $region27: #{tpu_custom_call.1} parent=19 // pred_region
          %p137 = scmp.lt.s32.totalorder %s10, 3
          %s138 = scalar_select %p137, %s10, 3
          %s139 = smul.addr %s138, 4
          %s140 = smul.addr %s139, 4
          %s141 = scalar_lea.vmem %s2, %s140
        $region28: #{tpu_custom_call.1} parent=19 // pred_fallthru
          _
      $region20: #{tpu_custom_call.1} parent=5 // pred_fallthru
        _
      %p142 = scmp.le.s32.totalorder 1, %s10
      %p143 = scmp.lt.s32.totalorder %s10, 5
      %p144 = pnand %p142, %p143
      %p145 = pneg %p144
      // Predicated region
      $region29: #{tpu_custom_call.1} parent=5 // pred_check
        _
      $region30: #{tpu_custom_call.1} parent=5 // pred_check_branch
        %147 = sbr.rel (%p144) target = $region32
      $region31: #{tpu_custom_call.1} parent=5 // pred_region
        %s148 = ssub.s32 %s10, 1
        %p149 = pneg %p31
        %p150 = pneg %p28
        %p151 = scmp.lt.s32.totalorder %s15, 3
        %s152 = scalar_select %p151, %s15, 3
        %s153 = smul.addr %s152, 4
        %s154 = smul.addr %s153, 4
        %s155 = scalar_lea.vmem %s1, %s154
        %p156 = pneg %p57
        %p157 = pneg %p54
        %p158 = scmp.lt.s32.totalorder %s15, 3
        %s159 = scalar_select %p158, %s15, 3
        %s160 = smul.addr %s159, 4
        %s161 = smul.addr %s160, 4
        %s162 = scalar_lea.vmem %s2, %s161
        %p163 = pneg %p83
        %p164 = pneg %p80
        %p165 = pneg %p104
        %p166 = pneg %p101
        %p167 = scmp.lt.s32.totalorder %s15, 3
        %s168 = scalar_select %p167, %s15, 3
        %s169 = smul.addr %s168, 4
        %s170 = smul.addr %s169, 4
        %s171 = scalar_lea.vmem %s1, %s170
        %p172 = scmp.lt.s32.totalorder %s15, 3
        %s173 = scalar_select %p172, %s15, 3
        %s174 = smul.addr %s173, 4
        %s175 = smul.addr %s174, 4
        %s176 = scalar_lea.vmem %s2, %s175
        %p177 = scmp.eq.s32.totalorder %s15, 0
        // Predicated region
        $region33: #{tpu_custom_call.1} parent=31 // pred_check
          %p178 = pneg %p177
        $region34: #{tpu_custom_call.1} parent=31 // pred_check_branch
          %180 = sbr.rel (%p178) target = $region36
        $region35: #{tpu_custom_call.1} parent=31 // pred_region
          %vm181 = vcmask 0
          %182 = vst.msk [vmem:[#allocation2] sm:$0x1] %vm181, 0.0
          %vm183 = vcmask 3072
          %184 = vst.msk [vmem:[#allocation3] sm:$0xf] %vm183, 0.0
          %185 = vst.msk [vmem:[#allocation3 + $0x4] sm:$0xf] %vm183, 0.0
          %186 = vst.msk [vmem:[#allocation3 + $0x8] sm:$0xf] %vm183, 0.0
          %187 = vst.msk [vmem:[#allocation3 + $0xc] sm:$0xf] %vm183, 0.0
        $region36: #{tpu_custom_call.1} parent=31 // pred_fallthru
          _
        %v188 = vld [vmem:[%s171] sm:$0xf]
        %v189 = vld [vmem:[%s171 + $0x4] sm:$0xf]
        %v190 = vld [vmem:[%s171 + $0x8] sm:$0xf]
        %v191 = vld [vmem:[%s171 + $0xc] sm:$0xf]
        %v192 = vld [vmem:[%s176] sm:$0xf]
        %v193 = vld [vmem:[%s176 + $0x4] sm:$0xf]
        %v194 = vld [vmem:[%s176 + $0x8] sm:$0xf]
        %v195 = vld [vmem:[%s176 + $0xc] sm:$0xf]
        %v196 = vsub.f32 %v188, %v192
        %v197 = vsub.f32 %v189, %v193
        %v198 = vsub.f32 %v190, %v194
        %v199 = vsub.f32 %v191, %v195
        %v200 = vld [vmem:[#allocation2] sm:$0x1]
        %v201 = vmul.f32 %v196, %v196
        %v202 = vmul.f32 %v197, %v197
        %v203 = vmul.f32 %v198, %v198
        %v204 = vmul.f32 %v199, %v199
        %206 = vset.pattern.permute.xlu0 4
        %207 = vperm.xlu0 %206, %v192
        %v208 = vpop.permute.xlu0 %207
        %211 = vset.pattern.permute.xlu0 4
        %212 = vperm.xlu0 %211, %v193
        %v213 = vpop.permute.xlu0 %212
        %216 = vset.pattern.permute.xlu0 4
        %217 = vperm.xlu0 %216, %v194
        %v218 = vpop.permute.xlu0 %217
        %221 = vset.pattern.permute.xlu0 4
        %222 = vperm.xlu0 %221, %v195
        %v223 = vpop.permute.xlu0 %222
        %v225 = vmul.f32 %v208, %v201
        %v226 = vmul.f32 %v213, %v202
        %v227 = vmul.f32 %v218, %v203
        %v228 = vmul.f32 %v223, %v204
        %233 = vrot.lane.b32.xlu0 %v225, 108
        %v234 = vpop.permute.xlu0 %233
        %235 = vrot.lane.b32.xlu0 %v226, 108
        %v236 = vpop.permute.xlu0 %235
        %237 = vrot.lane.b32.xlu0 %v227, 108
        %v238 = vpop.permute.xlu0 %237
        %239 = vrot.lane.b32.xlu0 %v228, 108
        %v240 = vpop.permute.xlu0 %239
        %vm245 = vcmask 93184
        %v246 = vsel %vm245, %v234, 0.0
        %v247 = vsel %vm245, %v236, 0.0
        %v248 = vadd.f32 %v246, %v247
        %v249 = vsel %vm245, %v238, 0.0
        %v250 = vadd.f32 %v248, %v249
        %v251 = vsel %vm245, %v240, 0.0
        %v252 = vadd.f32 %v250, %v251
        %253 = vadd.xlane.f32.xlu0 %v252
        %v254 = vpop.xlane.xlu0 %253
        %v255 = vrot.slane %v254, 4
        %v256 = vadd.f32 %v254, %v255
        %v257 = vrot.slane %v256, 2
        %v258 = vadd.f32 %v256, %v257
        %v259 = vrot.slane %v258, 1
        %v260 = vadd.f32 %v258, %v259
        %s261 = vtos %v260
        %v262 = vstv %s261
        %v263 = vadd.f32 %v200, %v262
        %vm264 = vcmask 0
        %265 = vst.msk [vmem:[#allocation2] sm:$0x1] %vm264, %v263
        %v266 = vld [vmem:[#allocation3] sm:$0xf]
        %v267 = vld [vmem:[#allocation3 + $0x4] sm:$0xf]
        %v268 = vld [vmem:[#allocation3 + $0x8] sm:$0xf]
        %v269 = vld [vmem:[#allocation3 + $0xc] sm:$0xf]
        %270 = vrot.lane.b32.xlu0 %v192, 124
        %v271 = vpop.permute.xlu0 %270
        %272 = vrot.lane.b32.xlu0 %v193, 124
        %v273 = vpop.permute.xlu0 %272
        %274 = vrot.lane.b32.xlu0 %v194, 124
        %v275 = vpop.permute.xlu0 %274
        %276 = vrot.lane.b32.xlu0 %v195, 124
        %v277 = vpop.permute.xlu0 %276
        %v282 = vadd.f32 %v266, %v271
        %v283 = vadd.f32 %v267, %v273
        %v284 = vadd.f32 %v268, %v275
        %v285 = vadd.f32 %v269, %v277
        %vm286 = vcmask 3072
        %287 = vst.msk [vmem:[#allocation3] sm:$0xf] %vm286, %v282
        %288 = vst.msk [vmem:[#allocation3 + $0x4] sm:$0xf] %vm286, %v283
        %289 = vst.msk [vmem:[#allocation3 + $0x8] sm:$0xf] %vm286, %v284
        %290 = vst.msk [vmem:[#allocation3 + $0xc] sm:$0xf] %vm286, %v285
        %p291 = scmp.eq.s32.totalorder %s15, 3
        // Predicated region
        $region37: #{tpu_custom_call.1} parent=31 // pred_check
          %p292 = pneg %p291
        $region38: #{tpu_custom_call.1} parent=31 // pred_check_branch
          %294 = sbr.rel (%p292) target = $region40
        $region39: #{tpu_custom_call.1} parent=31 // pred_region
          %v295 = vld [vmem:[%s0] sm:$0xf]
          %v296 = vld [vmem:[%s0 + $0x4] sm:$0xf]
          %v297 = vld [vmem:[%s0 + $0x8] sm:$0xf]
          %v298 = vld [vmem:[%s0 + $0xc] sm:$0xf]
          %v299 = vld [vmem:[%s0 + $0x10] sm:$0xf]
          %v300 = vld [vmem:[%s0 + $0x14] sm:$0xf]
          %v301 = vld [vmem:[%s0 + $0x18] sm:$0xf]
          %v302 = vld [vmem:[%s0 + $0x1c] sm:$0xf]
          %v303 = vld [vmem:[%s0 + $0x20] sm:$0xf]
          %v304 = vld [vmem:[%s0 + $0x24] sm:$0xf]
          %v305 = vld [vmem:[%s0 + $0x28] sm:$0xf]
          %v306 = vld [vmem:[%s0 + $0x2c] sm:$0xf]
          %v307 = vld [vmem:[%s0 + $0x30] sm:$0xf]
          %v308 = vld [vmem:[%s0 + $0x34] sm:$0xf]
          %v309 = vld [vmem:[%s0 + $0x38] sm:$0xf]
          %v310 = vld [vmem:[%s0 + $0x3c] sm:$0xf]
          %s311 = scalar_lea.vmem %s0, 64
          %v312 = vld [vmem:[%s311] sm:$0xf]
          %v313 = vld [vmem:[%s311 + $0x4] sm:$0xf]
          %v314 = vld [vmem:[%s311 + $0x8] sm:$0xf]
          %v315 = vld [vmem:[%s311 + $0xc] sm:$0xf]
          %v316 = vld [vmem:[%s311 + $0x10] sm:$0xf]
          %v317 = vld [vmem:[%s311 + $0x14] sm:$0xf]
          %v318 = vld [vmem:[%s311 + $0x18] sm:$0xf]
          %v319 = vld [vmem:[%s311 + $0x1c] sm:$0xf]
          %v320 = vld [vmem:[%s311 + $0x20] sm:$0xf]
          %v321 = vld [vmem:[%s311 + $0x24] sm:$0xf]
          %v322 = vld [vmem:[%s311 + $0x28] sm:$0xf]
          %v323 = vld [vmem:[%s311 + $0x2c] sm:$0xf]
          %v324 = vld [vmem:[%s311 + $0x30] sm:$0xf]
          %v325 = vld [vmem:[%s311 + $0x34] sm:$0xf]
          %v326 = vld [vmem:[%s311 + $0x38] sm:$0xf]
          %v327 = vld [vmem:[%s311 + $0x3c] sm:$0xf]
          %s328 = scalar_lea.vmem %s0, 128
          %v329 = vld [vmem:[%s328] sm:$0xf]
          %v330 = vld [vmem:[%s328 + $0x4] sm:$0xf]
          %v331 = vld [vmem:[%s328 + $0x8] sm:$0xf]
          %v332 = vld [vmem:[%s328 + $0xc] sm:$0xf]
          %v333 = vld [vmem:[%s328 + $0x10] sm:$0xf]
          %v334 = vld [vmem:[%s328 + $0x14] sm:$0xf]
          %v335 = vld [vmem:[%s328 + $0x18] sm:$0xf]
          %v336 = vld [vmem:[%s328 + $0x1c] sm:$0xf]
          %v337 = vld [vmem:[%s328 + $0x20] sm:$0xf]
          %v338 = vld [vmem:[%s328 + $0x24] sm:$0xf]
          %v339 = vld [vmem:[%s328 + $0x28] sm:$0xf]
          %v340 = vld [vmem:[%s328 + $0x2c] sm:$0xf]
          %v341 = vld [vmem:[%s328 + $0x30] sm:$0xf]
          %v342 = vld [vmem:[%s328 + $0x34] sm:$0xf]
          %v343 = vld [vmem:[%s328 + $0x38] sm:$0xf]
          %v344 = vld [vmem:[%s328 + $0x3c] sm:$0xf]
          %s345 = scalar_lea.vmem %s0, 192
          %v346 = vld [vmem:[%s345] sm:$0xf]
          %v347 = vld [vmem:[%s345 + $0x4] sm:$0xf]
          %v348 = vld [vmem:[%s345 + $0x8] sm:$0xf]
          %v349 = vld [vmem:[%s345 + $0xc] sm:$0xf]
          %v350 = vld [vmem:[%s345 + $0x10] sm:$0xf]
          %v351 = vld [vmem:[%s345 + $0x14] sm:$0xf]
          %v352 = vld [vmem:[%s345 + $0x18] sm:$0xf]
          %v353 = vld [vmem:[%s345 + $0x1c] sm:$0xf]
          %v354 = vld [vmem:[%s345 + $0x20] sm:$0xf]
          %v355 = vld [vmem:[%s345 + $0x24] sm:$0xf]
          %v356 = vld [vmem:[%s345 + $0x28] sm:$0xf]
          %v357 = vld [vmem:[%s345 + $0x2c] sm:$0xf]
          %v358 = vld [vmem:[%s345 + $0x30] sm:$0xf]
          %v359 = vld [vmem:[%s345 + $0x34] sm:$0xf]
          %v360 = vld [vmem:[%s345 + $0x38] sm:$0xf]
          %v361 = vld [vmem:[%s345 + $0x3c] sm:$0xf]
          %s362 = scalar_lea.vmem %s0, 256
          %v363 = vld [vmem:[%s362] sm:$0xf]
          %v364 = vld [vmem:[%s362 + $0x4] sm:$0xf]
          %v365 = vld [vmem:[%s362 + $0x8] sm:$0xf]
          %v366 = vld [vmem:[%s362 + $0xc] sm:$0xf]
          %v367 = vld [vmem:[%s362 + $0x10] sm:$0xf]
          %v368 = vld [vmem:[%s362 + $0x14] sm:$0xf]
          %v369 = vld [vmem:[%s362 + $0x18] sm:$0xf]
          %v370 = vld [vmem:[%s362 + $0x1c] sm:$0xf]
          %v371 = vld [vmem:[%s362 + $0x20] sm:$0xf]
          %v372 = vld [vmem:[%s362 + $0x24] sm:$0xf]
          %v373 = vld [vmem:[%s362 + $0x28] sm:$0xf]
          %v374 = vld [vmem:[%s362 + $0x2c] sm:$0xf]
          %v375 = vld [vmem:[%s362 + $0x30] sm:$0xf]
          %v376 = vld [vmem:[%s362 + $0x34] sm:$0xf]
          %v377 = vld [vmem:[%s362 + $0x38] sm:$0xf]
          %v378 = vld [vmem:[%s362 + $0x3c] sm:$0xf]
          %s379 = scalar_lea.vmem %s0, 320
          %v380 = vld [vmem:[%s379] sm:$0xf]
          %v381 = vld [vmem:[%s379 + $0x4] sm:$0xf]
          %v382 = vld [vmem:[%s379 + $0x8] sm:$0xf]
          %v383 = vld [vmem:[%s379 + $0xc] sm:$0xf]
          %v384 = vld [vmem:[%s379 + $0x10] sm:$0xf]
          %v385 = vld [vmem:[%s379 + $0x14] sm:$0xf]
          %v386 = vld [vmem:[%s379 + $0x18] sm:$0xf]
          %v387 = vld [vmem:[%s379 + $0x1c] sm:$0xf]
          %v388 = vld [vmem:[%s379 + $0x20] sm:$0xf]
          %v389 = vld [vmem:[%s379 + $0x24] sm:$0xf]
          %v390 = vld [vmem:[%s379 + $0x28] sm:$0xf]
          %v391 = vld [vmem:[%s379 + $0x2c] sm:$0xf]
          %v392 = vld [vmem:[%s379 + $0x30] sm:$0xf]
          %v393 = vld [vmem:[%s379 + $0x34] sm:$0xf]
          %v394 = vld [vmem:[%s379 + $0x38] sm:$0xf]
          %v395 = vld [vmem:[%s379 + $0x3c] sm:$0xf]
          %s396 = scalar_lea.vmem %s0, 384
          %v397 = vld [vmem:[%s396] sm:$0xf]
          %v398 = vld [vmem:[%s396 + $0x4] sm:$0xf]
          %v399 = vld [vmem:[%s396 + $0x8] sm:$0xf]
          %v400 = vld [vmem:[%s396 + $0xc] sm:$0xf]
          %v401 = vld [vmem:[%s396 + $0x10] sm:$0xf]
          %v402 = vld [vmem:[%s396 + $0x14] sm:$0xf]
          %v403 = vld [vmem:[%s396 + $0x18] sm:$0xf]
          %v404 = vld [vmem:[%s396 + $0x1c] sm:$0xf]
          %v405 = vld [vmem:[%s396 + $0x20] sm:$0xf]
          %v406 = vld [vmem:[%s396 + $0x24] sm:$0xf]
          %v407 = vld [vmem:[%s396 + $0x28] sm:$0xf]
          %v408 = vld [vmem:[%s396 + $0x2c] sm:$0xf]
          %v409 = vld [vmem:[%s396 + $0x30] sm:$0xf]
          %v410 = vld [vmem:[%s396 + $0x34] sm:$0xf]
          %v411 = vld [vmem:[%s396 + $0x38] sm:$0xf]
          %v412 = vld [vmem:[%s396 + $0x3c] sm:$0xf]
          %s413 = scalar_lea.vmem %s0, 448
          %v414 = vld [vmem:[%s413] sm:$0xf]
          %v415 = vld [vmem:[%s413 + $0x4] sm:$0xf]
          %v416 = vld [vmem:[%s413 + $0x8] sm:$0xf]
          %v417 = vld [vmem:[%s413 + $0xc] sm:$0xf]
          %v418 = vld [vmem:[%s413 + $0x10] sm:$0xf]
          %v419 = vld [vmem:[%s413 + $0x14] sm:$0xf]
          %v420 = vld [vmem:[%s413 + $0x18] sm:$0xf]
          %v421 = vld [vmem:[%s413 + $0x1c] sm:$0xf]
          %v422 = vld [vmem:[%s413 + $0x20] sm:$0xf]
          %v423 = vld [vmem:[%s413 + $0x24] sm:$0xf]
          %v424 = vld [vmem:[%s413 + $0x28] sm:$0xf]
          %v425 = vld [vmem:[%s413 + $0x2c] sm:$0xf]
          %v426 = vld [vmem:[%s413 + $0x30] sm:$0xf]
          %v427 = vld [vmem:[%s413 + $0x34] sm:$0xf]
          %v428 = vld [vmem:[%s413 + $0x38] sm:$0xf]
          %v429 = vld [vmem:[%s413 + $0x3c] sm:$0xf]
          %v430 = vlaneseq
          %v431 = vshrl.u32 %v430, 7
          %v432 = vcvt.s32.f32 %v431
          %v433 = vmul.f32 %v432, 0.25
          %v434 = vadd.f32 %v295, %v433
          %v435 = vadd.f32 %v299, %v433
          %v436 = vadd.f32 %v303, %v433
          %v437 = vadd.f32 %v307, %v433
          %v438 = vadd.f32 %v296, %v433
          %v439 = vadd.f32 %v300, %v433
          %v440 = vadd.f32 %v304, %v433
          %v441 = vadd.f32 %v308, %v433
          %v442 = vadd.f32 %v297, %v433
          %v443 = vadd.f32 %v301, %v433
          %v444 = vadd.f32 %v305, %v433
          %v445 = vadd.f32 %v309, %v433
          %v446 = vadd.f32 %v298, %v433
          %v447 = vadd.f32 %v302, %v433
          %v448 = vadd.f32 %v306, %v433
          %v449 = vadd.f32 %v310, %v433
          %v450 = vadd.f32 %v363, %v433
          %v451 = vadd.f32 %v367, %v433
          %v452 = vadd.f32 %v371, %v433
          %v453 = vadd.f32 %v375, %v433
          %v454 = vadd.f32 %v364, %v433
          %v455 = vadd.f32 %v368, %v433
          %v456 = vadd.f32 %v372, %v433
          %v457 = vadd.f32 %v376, %v433
          %v458 = vadd.f32 %v365, %v433
          %v459 = vadd.f32 %v369, %v433
          %v460 = vadd.f32 %v373, %v433
          %v461 = vadd.f32 %v377, %v433
          %v462 = vadd.f32 %v366, %v433
          %v463 = vadd.f32 %v370, %v433
          %v464 = vadd.f32 %v374, %v433
          %v465 = vadd.f32 %v378, %v433
          %v466 = vmul.f32 %v442, 0.5
          %v467 = vmul.f32 %v443, 0.5
          %v468 = vmul.f32 %v444, 0.5
          %v469 = vmul.f32 %v445, 0.5
          %v470 = vsub.f32 %v434, %v466
          %v471 = vsub.f32 %v435, %v467
          %v472 = vsub.f32 %v436, %v468
          %v473 = vsub.f32 %v437, %v469
          %v474 = vmul.f32 %v458, 0.5
          %v475 = vmul.f32 %v459, 0.5
          %v476 = vmul.f32 %v460, 0.5
          %v477 = vmul.f32 %v461, 0.5
          %v478 = vsub.f32 %v450, %v474
          %v479 = vsub.f32 %v451, %v475
          %v480 = vsub.f32 %v452, %v476
          %v481 = vsub.f32 %v453, %v477
          %v482 = vmax.f32 %v470, %v478
          %v483 = vmax.f32 %v471, %v479
          %v484 = vmax.f32 %v472, %v480
          %v485 = vmax.f32 %v473, %v481
          %v486 = vmul.f32 %v446, 0.5
          %v487 = vmul.f32 %v447, 0.5
          %v488 = vmul.f32 %v448, 0.5
          %v489 = vmul.f32 %v449, 0.5
          %v490 = vsub.f32 %v438, %v486
          %v491 = vsub.f32 %v439, %v487
          %v492 = vsub.f32 %v440, %v488
          %v493 = vsub.f32 %v441, %v489
          %v494 = vmul.f32 %v462, 0.5
          %v495 = vmul.f32 %v463, 0.5
          %v496 = vmul.f32 %v464, 0.5
          %v497 = vmul.f32 %v465, 0.5
          %v498 = vsub.f32 %v454, %v494
          %v499 = vsub.f32 %v455, %v495
          %v500 = vsub.f32 %v456, %v496
          %v501 = vsub.f32 %v457, %v497
          %v502 = vmax.f32 %v490, %v498
          %v503 = vmax.f32 %v491, %v499
          %v504 = vmax.f32 %v492, %v500
          %v505 = vmax.f32 %v493, %v501
          %v506 = vadd.f32 %v434, %v466
          %v507 = vadd.f32 %v435, %v467
          %v508 = vadd.f32 %v436, %v468
          %v509 = vadd.f32 %v437, %v469
          %v510 = vadd.f32 %v450, %v474
          %v511 = vadd.f32 %v451, %v475
          %v512 = vadd.f32 %v452, %v476
          %v513 = vadd.f32 %v453, %v477
          %v514 = vmin.f32 %v506, %v510
          %v515 = vmin.f32 %v507, %v511
          %v516 = vmin.f32 %v508, %v512
          %v517 = vmin.f32 %v509, %v513
          %v518 = vadd.f32 %v438, %v486
          %v519 = vadd.f32 %v439, %v487
          %v520 = vadd.f32 %v440, %v488
          %v521 = vadd.f32 %v441, %v489
          %v522 = vadd.f32 %v454, %v494
          %v523 = vadd.f32 %v455, %v495
          %v524 = vadd.f32 %v456, %v496
          %v525 = vadd.f32 %v457, %v497
          %v526 = vmin.f32 %v518, %v522
          %v527 = vmin.f32 %v519, %v523
          %v528 = vmin.f32 %v520, %v524
          %v529 = vmin.f32 %v521, %v525
          %v530 = vsub.f32 %v514, %v482
          %v531 = vsub.f32 %v515, %v483
          %v532 = vsub.f32 %v516, %v484
          %v533 = vsub.f32 %v517, %v485
          %v534 = vmax.f32 %v530, 0.0
          %v535 = vmax.f32 %v531, 0.0
          %v536 = vmax.f32 %v532, 0.0
          %v537 = vmax.f32 %v533, 0.0
          %v538 = vsub.f32 %v526, %v502
          %v539 = vsub.f32 %v527, %v503
          %v540 = vsub.f32 %v528, %v504
          %v541 = vsub.f32 %v529, %v505
          %v542 = vmax.f32 %v538, 0.0
          %v543 = vmax.f32 %v539, 0.0
          %v544 = vmax.f32 %v540, 0.0
          %v545 = vmax.f32 %v541, 0.0
          %v546 = vmul.f32 %v534, %v542
          %v547 = vmul.f32 %v535, %v543
          %v548 = vmul.f32 %v536, %v544
          %v549 = vmul.f32 %v537, %v545
          %v550 = vmul.f32 %v442, %v446
          %v551 = vmul.f32 %v443, %v447
          %v552 = vmul.f32 %v444, %v448
          %v553 = vmul.f32 %v445, %v449
          %v554 = vmul.f32 %v458, %v462
          %v555 = vmul.f32 %v459, %v463
          %v556 = vmul.f32 %v460, %v464
          %v557 = vmul.f32 %v461, %v465
          %v558 = vadd.f32 %v550, %v554
          %v559 = vadd.f32 %v551, %v555
          %v560 = vadd.f32 %v552, %v556
          %v561 = vadd.f32 %v553, %v557
          %v562 = vsub.f32 %v558, %v546
          %v563 = vsub.f32 %v559, %v547
          %v564 = vsub.f32 %v560, %v548
          %v565 = vsub.f32 %v561, %v549
          %v566 = vrcp.pop %v562
          %v567 = vmul.f32 %v546, %v566
          %v568 = vrcp.pop %v563
          %v569 = vmul.f32 %v547, %v568
          %v570 = vrcp.pop %v564
          %v571 = vmul.f32 %v548, %v570
          %v572 = vrcp.pop %v565
          %v573 = vmul.f32 %v549, %v572
          %v574 = vadd.f32 %v567, 1e-06
          %v575 = vadd.f32 %v569, 1e-06
          %v576 = vadd.f32 %v571, 1e-06
          %v577 = vadd.f32 %v573, 1e-06
          %v578 = vadd.f32 %v312, 0.0
          %v579 = vadd.f32 %v316, 0.0
          %v580 = vadd.f32 %v320, 0.0
          %v581 = vadd.f32 %v324, 0.0
          %v582 = vadd.f32 %v313, 0.25
          %v583 = vadd.f32 %v317, 0.25
          %v584 = vadd.f32 %v321, 0.25
          %v585 = vadd.f32 %v325, 0.25
          %v586 = vadd.f32 %v314, 0.5
          %v587 = vadd.f32 %v318, 0.5
          %v588 = vadd.f32 %v322, 0.5
          %v589 = vadd.f32 %v326, 0.5
          %v590 = vadd.f32 %v315, 0.75
          %v591 = vadd.f32 %v319, 0.75
          %v592 = vadd.f32 %v323, 0.75
          %v593 = vadd.f32 %v327, 0.75
          %v594 = vadd.f32 %v380, 0.0
          %v595 = vadd.f32 %v384, 0.0
          %v596 = vadd.f32 %v388, 0.0
          %v597 = vadd.f32 %v392, 0.0
          %v598 = vadd.f32 %v381, 0.25
          %v599 = vadd.f32 %v385, 0.25
          %v600 = vadd.f32 %v389, 0.25
          %v601 = vadd.f32 %v393, 0.25
          %v602 = vadd.f32 %v382, 0.5
          %v603 = vadd.f32 %v386, 0.5
          %v604 = vadd.f32 %v390, 0.5
          %v605 = vadd.f32 %v394, 0.5
          %v606 = vadd.f32 %v383, 0.75
          %v607 = vadd.f32 %v387, 0.75
          %v608 = vadd.f32 %v391, 0.75
          %v609 = vadd.f32 %v395, 0.75
          %v610 = vmul.f32 %v586, 0.5
          %v611 = vmul.f32 %v587, 0.5
          %v612 = vmul.f32 %v588, 0.5
          %v613 = vmul.f32 %v589, 0.5
          %v614 = vsub.f32 %v578, %v610
          %v615 = vsub.f32 %v579, %v611
          %v616 = vsub.f32 %v580, %v612
          %v617 = vsub.f32 %v581, %v613
          %v618 = vmul.f32 %v602, 0.5
          %v619 = vmul.f32 %v603, 0.5
          %v620 = vmul.f32 %v604, 0.5
          %v621 = vmul.f32 %v605, 0.5
          %v622 = vsub.f32 %v594, %v618
          %v623 = vsub.f32 %v595, %v619
          %v624 = vsub.f32 %v596, %v620
          %v625 = vsub.f32 %v597, %v621
          %v626 = vmax.f32 %v614, %v622
          %v627 = vmax.f32 %v615, %v623
          %v628 = vmax.f32 %v616, %v624
          %v629 = vmax.f32 %v617, %v625
          %v630 = vmul.f32 %v590, 0.5
          %v631 = vmul.f32 %v591, 0.5
          %v632 = vmul.f32 %v592, 0.5
          %v633 = vmul.f32 %v593, 0.5
          %v634 = vsub.f32 %v582, %v630
          %v635 = vsub.f32 %v583, %v631
          %v636 = vsub.f32 %v584, %v632
          %v637 = vsub.f32 %v585, %v633
          %v638 = vmul.f32 %v606, 0.5
          %v639 = vmul.f32 %v607, 0.5
          %v640 = vmul.f32 %v608, 0.5
          %v641 = vmul.f32 %v609, 0.5
          %v642 = vsub.f32 %v598, %v638
          %v643 = vsub.f32 %v599, %v639
          %v644 = vsub.f32 %v600, %v640
          %v645 = vsub.f32 %v601, %v641
          %v646 = vmax.f32 %v634, %v642
          %v647 = vmax.f32 %v635, %v643
          %v648 = vmax.f32 %v636, %v644
          %v649 = vmax.f32 %v637, %v645
          %v650 = vadd.f32 %v578, %v610
          %v651 = vadd.f32 %v579, %v611
          %v652 = vadd.f32 %v580, %v612
          %v653 = vadd.f32 %v581, %v613
          %v654 = vadd.f32 %v594, %v618
          %v655 = vadd.f32 %v595, %v619
          %v656 = vadd.f32 %v596, %v620
          %v657 = vadd.f32 %v597, %v621
          %v658 = vmin.f32 %v650, %v654
          %v659 = vmin.f32 %v651, %v655
          %v660 = vmin.f32 %v652, %v656
          %v661 = vmin.f32 %v653, %v657
          %v662 = vadd.f32 %v582, %v630
          %v663 = vadd.f32 %v583, %v631
          %v664 = vadd.f32 %v584, %v632
          %v665 = vadd.f32 %v585, %v633
          %v666 = vadd.f32 %v598, %v638
          %v667 = vadd.f32 %v599, %v639
          %v668 = vadd.f32 %v600, %v640
          %v669 = vadd.f32 %v601, %v641
          %v670 = vmin.f32 %v662, %v666
          %v671 = vmin.f32 %v663, %v667
          %v672 = vmin.f32 %v664, %v668
          %v673 = vmin.f32 %v665, %v669
          %v674 = vsub.f32 %v658, %v626
          %v675 = vsub.f32 %v659, %v627
          %v676 = vsub.f32 %v660, %v628
          %v677 = vsub.f32 %v661, %v629
          %v678 = vmax.f32 %v674, 0.0
          %v679 = vmax.f32 %v675, 0.0
          %v680 = vmax.f32 %v676, 0.0
          %v681 = vmax.f32 %v677, 0.0
          %v682 = vsub.f32 %v670, %v646
          %v683 = vsub.f32 %v671, %v647
          %v684 = vsub.f32 %v672, %v648
          %v685 = vsub.f32 %v673, %v649
          %v686 = vmax.f32 %v682, 0.0
          %v687 = vmax.f32 %v683, 0.0
          %v688 = vmax.f32 %v684, 0.0
          %v689 = vmax.f32 %v685, 0.0
          %v690 = vmul.f32 %v678, %v686
          %v691 = vmul.f32 %v679, %v687
          %v692 = vmul.f32 %v680, %v688
          %v693 = vmul.f32 %v681, %v689
          %v694 = vmul.f32 %v586, %v590
          %v695 = vmul.f32 %v587, %v591
          %v696 = vmul.f32 %v588, %v592
          %v697 = vmul.f32 %v589, %v593
          %v698 = vmul.f32 %v602, %v606
          %v699 = vmul.f32 %v603, %v607
          %v700 = vmul.f32 %v604, %v608
          %v701 = vmul.f32 %v605, %v609
          %v702 = vadd.f32 %v694, %v698
          %v703 = vadd.f32 %v695, %v699
          %v704 = vadd.f32 %v696, %v700
          %v705 = vadd.f32 %v697, %v701
          %v706 = vsub.f32 %v702, %v690
          %v707 = vsub.f32 %v703, %v691
          %v708 = vsub.f32 %v704, %v692
          %v709 = vsub.f32 %v705, %v693
          %v710 = vrcp.pop %v706
          %v711 = vmul.f32 %v690, %v710
          %v712 = vrcp.pop %v707
          %v713 = vmul.f32 %v691, %v712
          %v714 = vrcp.pop %v708
          %v715 = vmul.f32 %v692, %v714
          %v716 = vrcp.pop %v709
          %v717 = vmul.f32 %v693, %v716
          %v718 = vadd.f32 %v711, 1e-06
          %v719 = vadd.f32 %v713, 1e-06
          %v720 = vadd.f32 %v715, 1e-06
          %v721 = vadd.f32 %v717, 1e-06
          %v722 = vmul.f32 %v329, %v329
          %v723 = vmul.f32 %v333, %v333
          %v724 = vmul.f32 %v337, %v337
          %v725 = vmul.f32 %v341, %v341
          %v726 = vmul.f32 %v330, %v330
          %v727 = vmul.f32 %v334, %v334
          %v728 = vmul.f32 %v338, %v338
          %v729 = vmul.f32 %v342, %v342
          %v730 = vmul.f32 %v331, %v331
          %v731 = vmul.f32 %v335, %v335
          %v732 = vmul.f32 %v339, %v339
          %v733 = vmul.f32 %v343, %v343
          %v734 = vmul.f32 %v332, %v332
          %v735 = vmul.f32 %v336, %v336
          %v736 = vmul.f32 %v340, %v340
          %v737 = vmul.f32 %v344, %v344
          %v738 = vmul.f32 %v397, %v397
          %v739 = vmul.f32 %v401, %v401
          %v740 = vmul.f32 %v405, %v405
          %v741 = vmul.f32 %v409, %v409
          %v742 = vmul.f32 %v398, %v398
          %v743 = vmul.f32 %v402, %v402
          %v744 = vmul.f32 %v406, %v406
          %v745 = vmul.f32 %v410, %v410
          %v746 = vmul.f32 %v399, %v399
          %v747 = vmul.f32 %v403, %v403
          %v748 = vmul.f32 %v407, %v407
          %v749 = vmul.f32 %v411, %v411
          %v750 = vmul.f32 %v400, %v400
          %v751 = vmul.f32 %v404, %v404
          %v752 = vmul.f32 %v408, %v408
          %v753 = vmul.f32 %v412, %v412
          %v754 = vmul.f32 %v730, 0.5
          %v755 = vmul.f32 %v731, 0.5
          %v756 = vmul.f32 %v732, 0.5
          %v757 = vmul.f32 %v733, 0.5
          %v758 = vsub.f32 %v722, %v754
          %v759 = vsub.f32 %v723, %v755
          %v760 = vsub.f32 %v724, %v756
          %v761 = vsub.f32 %v725, %v757
          %v762 = vmul.f32 %v746, 0.5
          %v763 = vmul.f32 %v747, 0.5
          %v764 = vmul.f32 %v748, 0.5
          %v765 = vmul.f32 %v749, 0.5
          %v766 = vsub.f32 %v738, %v762
          %v767 = vsub.f32 %v739, %v763
          %v768 = vsub.f32 %v740, %v764
          %v769 = vsub.f32 %v741, %v765
          %v770 = vmax.f32 %v758, %v766
          %v771 = vmax.f32 %v759, %v767
          %v772 = vmax.f32 %v760, %v768
          %v773 = vmax.f32 %v761, %v769
          %v774 = vmul.f32 %v734, 0.5
          %v775 = vmul.f32 %v735, 0.5
          %v776 = vmul.f32 %v736, 0.5
          %v777 = vmul.f32 %v737, 0.5
          %v778 = vsub.f32 %v726, %v774
          %v779 = vsub.f32 %v727, %v775
          %v780 = vsub.f32 %v728, %v776
          %v781 = vsub.f32 %v729, %v777
          %v782 = vmul.f32 %v750, 0.5
          %v783 = vmul.f32 %v751, 0.5
          %v784 = vmul.f32 %v752, 0.5
          %v785 = vmul.f32 %v753, 0.5
          %v786 = vsub.f32 %v742, %v782
          %v787 = vsub.f32 %v743, %v783
          %v788 = vsub.f32 %v744, %v784
          %v789 = vsub.f32 %v745, %v785
          %v790 = vmax.f32 %v778, %v786
          %v791 = vmax.f32 %v779, %v787
          %v792 = vmax.f32 %v780, %v788
          %v793 = vmax.f32 %v781, %v789
          %v794 = vadd.f32 %v722, %v754
          %v795 = vadd.f32 %v723, %v755
          %v796 = vadd.f32 %v724, %v756
          %v797 = vadd.f32 %v725, %v757
          %v798 = vadd.f32 %v738, %v762
          %v799 = vadd.f32 %v739, %v763
          %v800 = vadd.f32 %v740, %v764
          %v801 = vadd.f32 %v741, %v765
          %v802 = vmin.f32 %v794, %v798
          %v803 = vmin.f32 %v795, %v799
          %v804 = vmin.f32 %v796, %v800
          %v805 = vmin.f32 %v797, %v801
          %v806 = vadd.f32 %v726, %v774
          %v807 = vadd.f32 %v727, %v775
          %v808 = vadd.f32 %v728, %v776
          %v809 = vadd.f32 %v729, %v777
          %v810 = vadd.f32 %v742, %v782
          %v811 = vadd.f32 %v743, %v783
          %v812 = vadd.f32 %v744, %v784
          %v813 = vadd.f32 %v745, %v785
          %v814 = vmin.f32 %v806, %v810
          %v815 = vmin.f32 %v807, %v811
          %v816 = vmin.f32 %v808, %v812
          %v817 = vmin.f32 %v809, %v813
          %v818 = vsub.f32 %v802, %v770
          %v819 = vsub.f32 %v803, %v771
          %v820 = vsub.f32 %v804, %v772
          %v821 = vsub.f32 %v805, %v773
          %v822 = vmax.f32 %v818, 0.0
          %v823 = vmax.f32 %v819, 0.0
          %v824 = vmax.f32 %v820, 0.0
          %v825 = vmax.f32 %v821, 0.0
          %v826 = vsub.f32 %v814, %v790
          %v827 = vsub.f32 %v815, %v791
          %v828 = vsub.f32 %v816, %v792
          %v829 = vsub.f32 %v817, %v793
          %v830 = vmax.f32 %v826, 0.0
          %v831 = vmax.f32 %v827, 0.0
          %v832 = vmax.f32 %v828, 0.0
          %v833 = vmax.f32 %v829, 0.0
          %v834 = vmul.f32 %v822, %v830
          %v835 = vmul.f32 %v823, %v831
          %v836 = vmul.f32 %v824, %v832
          %v837 = vmul.f32 %v825, %v833
          %v838 = vmul.f32 %v730, %v734
          %v839 = vmul.f32 %v731, %v735
          %v840 = vmul.f32 %v732, %v736
          %v841 = vmul.f32 %v733, %v737
          %v842 = vmul.f32 %v746, %v750
          %v843 = vmul.f32 %v747, %v751
          %v844 = vmul.f32 %v748, %v752
          %v845 = vmul.f32 %v749, %v753
          %v846 = vadd.f32 %v838, %v842
          %v847 = vadd.f32 %v839, %v843
          %v848 = vadd.f32 %v840, %v844
          %v849 = vadd.f32 %v841, %v845
          %v850 = vsub.f32 %v846, %v834
          %v851 = vsub.f32 %v847, %v835
          %v852 = vsub.f32 %v848, %v836
          %v853 = vsub.f32 %v849, %v837
          %v854 = vrcp.pop %v850
          %v855 = vmul.f32 %v834, %v854
          %v856 = vrcp.pop %v851
          %v857 = vmul.f32 %v835, %v856
          %v858 = vrcp.pop %v852
          %v859 = vmul.f32 %v836, %v858
          %v860 = vrcp.pop %v853
          %v861 = vmul.f32 %v837, %v860
          %v862 = vadd.f32 %v855, 1e-06
          %v863 = vadd.f32 %v857, 1e-06
          %v864 = vadd.f32 %v859, 1e-06
          %v865 = vadd.f32 %v861, 1e-06
          %v866 = vmul.f32 %v346, %v346
          %v867 = vmul.f32 %v350, %v350
          %v868 = vmul.f32 %v354, %v354
          %v869 = vmul.f32 %v358, %v358
          %v870 = vmul.f32 %v347, %v347
          %v871 = vmul.f32 %v351, %v351
          %v872 = vmul.f32 %v355, %v355
          %v873 = vmul.f32 %v359, %v359
          %v874 = vmul.f32 %v348, %v348
          %v875 = vmul.f32 %v352, %v352
          %v876 = vmul.f32 %v356, %v356
          %v877 = vmul.f32 %v360, %v360
          %v878 = vmul.f32 %v349, %v349
          %v879 = vmul.f32 %v353, %v353
          %v880 = vmul.f32 %v357, %v357
          %v881 = vmul.f32 %v361, %v361
          %v882 = vmul.f32 %v414, %v414
          %v883 = vmul.f32 %v418, %v418
          %v884 = vmul.f32 %v422, %v422
          %v885 = vmul.f32 %v426, %v426
          %v886 = vmul.f32 %v415, %v415
          %v887 = vmul.f32 %v419, %v419
          %v888 = vmul.f32 %v423, %v423
          %v889 = vmul.f32 %v427, %v427
          %v890 = vmul.f32 %v416, %v416
          %v891 = vmul.f32 %v420, %v420
          %v892 = vmul.f32 %v424, %v424
          %v893 = vmul.f32 %v428, %v428
          %v894 = vmul.f32 %v417, %v417
          %v895 = vmul.f32 %v421, %v421
          %v896 = vmul.f32 %v425, %v425
          %v897 = vmul.f32 %v429, %v429
          %v898 = vmul.f32 %v874, 0.5
          %v899 = vmul.f32 %v875, 0.5
          %v900 = vmul.f32 %v876, 0.5
          %v901 = vmul.f32 %v877, 0.5
          %v902 = vsub.f32 %v866, %v898
          %v903 = vsub.f32 %v867, %v899
          %v904 = vsub.f32 %v868, %v900
          %v905 = vsub.f32 %v869, %v901
          %v906 = vmul.f32 %v890, 0.5
          %v907 = vmul.f32 %v891, 0.5
          %v908 = vmul.f32 %v892, 0.5
          %v909 = vmul.f32 %v893, 0.5
          %v910 = vsub.f32 %v882, %v906
          %v911 = vsub.f32 %v883, %v907
          %v912 = vsub.f32 %v884, %v908
          %v913 = vsub.f32 %v885, %v909
          %v914 = vmax.f32 %v902, %v910
          %v915 = vmax.f32 %v903, %v911
          %v916 = vmax.f32 %v904, %v912
          %v917 = vmax.f32 %v905, %v913
          %v918 = vmul.f32 %v878, 0.5
          %v919 = vmul.f32 %v879, 0.5
          %v920 = vmul.f32 %v880, 0.5
          %v921 = vmul.f32 %v881, 0.5
          %v922 = vsub.f32 %v870, %v918
          %v923 = vsub.f32 %v871, %v919
          %v924 = vsub.f32 %v872, %v920
          %v925 = vsub.f32 %v873, %v921
          %v926 = vmul.f32 %v894, 0.5
          %v927 = vmul.f32 %v895, 0.5
          %v928 = vmul.f32 %v896, 0.5
          %v929 = vmul.f32 %v897, 0.5
          %v930 = vsub.f32 %v886, %v926
          %v931 = vsub.f32 %v887, %v927
          %v932 = vsub.f32 %v888, %v928
          %v933 = vsub.f32 %v889, %v929
          %v934 = vmax.f32 %v922, %v930
          %v935 = vmax.f32 %v923, %v931
          %v936 = vmax.f32 %v924, %v932
          %v937 = vmax.f32 %v925, %v933
          %v938 = vadd.f32 %v866, %v898
          %v939 = vadd.f32 %v867, %v899
          %v940 = vadd.f32 %v868, %v900
          %v941 = vadd.f32 %v869, %v901
          %v942 = vadd.f32 %v882, %v906
          %v943 = vadd.f32 %v883, %v907
          %v944 = vadd.f32 %v884, %v908
          %v945 = vadd.f32 %v885, %v909
          %v946 = vmin.f32 %v938, %v942
          %v947 = vmin.f32 %v939, %v943
          %v948 = vmin.f32 %v940, %v944
          %v949 = vmin.f32 %v941, %v945
          %v950 = vadd.f32 %v870, %v918
          %v951 = vadd.f32 %v871, %v919
          %v952 = vadd.f32 %v872, %v920
          %v953 = vadd.f32 %v873, %v921
          %v954 = vadd.f32 %v886, %v926
          %v955 = vadd.f32 %v887, %v927
          %v956 = vadd.f32 %v888, %v928
          %v957 = vadd.f32 %v889, %v929
          %v958 = vmin.f32 %v950, %v954
          %v959 = vmin.f32 %v951, %v955
          %v960 = vmin.f32 %v952, %v956
          %v961 = vmin.f32 %v953, %v957
          %v962 = vsub.f32 %v946, %v914
          %v963 = vsub.f32 %v947, %v915
          %v964 = vsub.f32 %v948, %v916
          %v965 = vsub.f32 %v949, %v917
          %v966 = vmax.f32 %v962, 0.0
          %v967 = vmax.f32 %v963, 0.0
          %v968 = vmax.f32 %v964, 0.0
          %v969 = vmax.f32 %v965, 0.0
          %v970 = vsub.f32 %v958, %v934
          %v971 = vsub.f32 %v959, %v935
          %v972 = vsub.f32 %v960, %v936
          %v973 = vsub.f32 %v961, %v937
          %v974 = vmax.f32 %v970, 0.0
          %v975 = vmax.f32 %v971, 0.0
          %v976 = vmax.f32 %v972, 0.0
          %v977 = vmax.f32 %v973, 0.0
          %v978 = vmul.f32 %v966, %v974
          %v979 = vmul.f32 %v967, %v975
          %v980 = vmul.f32 %v968, %v976
          %v981 = vmul.f32 %v969, %v977
          %v982 = vmul.f32 %v874, %v878
          %v983 = vmul.f32 %v875, %v879
          %v984 = vmul.f32 %v876, %v880
          %v985 = vmul.f32 %v877, %v881
          %v986 = vmul.f32 %v890, %v894
          %v987 = vmul.f32 %v891, %v895
          %v988 = vmul.f32 %v892, %v896
          %v989 = vmul.f32 %v893, %v897
          %v990 = vadd.f32 %v982, %v986
          %v991 = vadd.f32 %v983, %v987
          %v992 = vadd.f32 %v984, %v988
          %v993 = vadd.f32 %v985, %v989
          %v994 = vsub.f32 %v990, %v978
          %v995 = vsub.f32 %v991, %v979
          %v996 = vsub.f32 %v992, %v980
          %v997 = vsub.f32 %v993, %v981
          %v998 = vrcp.pop %v994
          %v999 = vmul.f32 %v978, %v998
          %v1000 = vrcp.pop %v995
          %v1001 = vmul.f32 %v979, %v1000
          %v1002 = vrcp.pop %v996
          %v1003 = vmul.f32 %v980, %v1002
          %v1004 = vrcp.pop %v997
          %v1005 = vmul.f32 %v981, %v1004
          %v1006 = vadd.f32 %v999, 1e-06
          %v1007 = vadd.f32 %v1001, 1e-06
          %v1008 = vadd.f32 %v1003, 1e-06
          %v1009 = vadd.f32 %v1005, 1e-06
          %vm1010 = vcmask 27648
          %v1011 = vsel %vm1010, %v574, -inf
          %1012 = vmax.xlane.f32.xlu0 %v1011
          %v1013 = vpop.xlane.xlu0 %1012
          %v1014 = vsel %vm1010, %v575, -inf
          %1015 = vmax.xlane.f32.xlu0 %v1014
          %v1016 = vpop.xlane.xlu0 %1015
          %v1017 = vsel %vm1010, %v576, -inf
          %1018 = vmax.xlane.f32.xlu0 %v1017
          %v1019 = vpop.xlane.xlu0 %1018
          %v1020 = vsel %vm1010, %v577, -inf
          %1021 = vmax.xlane.f32.xlu0 %v1020
          %v1022 = vpop.xlane.xlu0 %1021
          %v1023 = vsel %vm1010, %v718, -inf
          %1024 = vmax.xlane.f32.xlu0 %v1023
          %v1025 = vpop.xlane.xlu0 %1024
          %v1026 = vsel %vm1010, %v719, -inf
          %1027 = vmax.xlane.f32.xlu0 %v1026
          %v1028 = vpop.xlane.xlu0 %1027
          %v1029 = vsel %vm1010, %v720, -inf
          %1030 = vmax.xlane.f32.xlu0 %v1029
          %v1031 = vpop.xlane.xlu0 %1030
          %v1032 = vsel %vm1010, %v721, -inf
          %1033 = vmax.xlane.f32.xlu0 %v1032
          %v1034 = vpop.xlane.xlu0 %1033
          %v1035 = vmax.f32 %v1013, %v1025
          %v1036 = vmax.f32 %v1016, %v1028
          %v1037 = vmax.f32 %v1019, %v1031
          %v1038 = vmax.f32 %v1022, %v1034
          %v1039 = vsel %vm1010, %v862, -inf
          %1040 = vmax.xlane.f32.xlu0 %v1039
          %v1041 = vpop.xlane.xlu0 %1040
          %v1042 = vsel %vm1010, %v863, -inf
          %1043 = vmax.xlane.f32.xlu0 %v1042
          %v1044 = vpop.xlane.xlu0 %1043
          %v1045 = vsel %vm1010, %v864, -inf
          %1046 = vmax.xlane.f32.xlu0 %v1045
          %v1047 = vpop.xlane.xlu0 %1046
          %v1048 = vsel %vm1010, %v865, -inf
          %1049 = vmax.xlane.f32.xlu0 %v1048
          %v1050 = vpop.xlane.xlu0 %1049
          %v1051 = vmax.f32 %v1035, %v1041
          %v1052 = vmax.f32 %v1036, %v1044
          %v1053 = vmax.f32 %v1037, %v1047
          %v1054 = vmax.f32 %v1038, %v1050
          %v1055 = vsel %vm1010, %v1006, -inf
          %1056 = vmax.xlane.f32.xlu0 %v1055
          %v1057 = vpop.xlane.xlu0 %1056
          %v1058 = vsel %vm1010, %v1007, -inf
          %1059 = vmax.xlane.f32.xlu0 %v1058
          %v1060 = vpop.xlane.xlu0 %1059
          %v1061 = vsel %vm1010, %v1008, -inf
          %1062 = vmax.xlane.f32.xlu0 %v1061
          %v1063 = vpop.xlane.xlu0 %1062
          %v1064 = vsel %vm1010, %v1009, -inf
          %1065 = vmax.xlane.f32.xlu0 %v1064
          %v1066 = vpop.xlane.xlu0 %1065
          %v1067 = vmax.f32 %v1051, %v1057
          %v1068 = vmax.f32 %v1052, %v1060
          %v1069 = vmax.f32 %v1053, %v1063
          %v1070 = vmax.f32 %v1054, %v1066
          %v1071 = vlaneseq
          %v1072 = vand.u32 %v1071, 127
          %vm1073 = vcmp.eq.f32.partialorder %v574, %v1067
          %vm1074 = vcmp.eq.f32.partialorder %v575, %v1068
          %vm1075 = vcmp.eq.f32.partialorder %v576, %v1069
          %vm1076 = vcmp.eq.f32.partialorder %v577, %v1070
          %v1077 = vsel %vm1073, %v1072, 4
          %v1078 = vsel %vm1074, %v1072, 4
          %v1079 = vsel %vm1075, %v1072, 4
          %v1080 = vsel %vm1076, %v1072, 4
          %v1081 = vsel %vm1010, %v1077, 2147483647
          %v1082 = vand.u32 %v1081, 65535
          %v1083 = vshra.s32 %v1081, 16
          %v1084 = vcvt.s32.f32 %v1082
          %v1085 = vcvt.s32.f32 %v1083
          %1086 = vmin.xlane.f32.xlu0 %v1085
          %v1087 = vpop.xlane.xlu0 %1086
          %vm1088 = vcmp.eq.f32.partialorder %v1085, %v1087
          %v1089 = vsel %vm1088, %v1084, inf
          %1090 = vmin.xlane.f32.xlu0 %v1089
          %v1091 = vpop.xlane.xlu0 %1090
          %v1092 = vcvt.f32.s32 %v1091
          %v1093 = vcvt.f32.s32 %v1087
          %v1094 = vshll.u32 %v1093, 16
          %v1095 = vadd.s32 %v1094, %v1092
          %v1096 = vsel %vm1010, %v1078, 2147483647
          %v1097 = vand.u32 %v1096, 65535
          %v1098 = vshra.s32 %v1096, 16
          %v1099 = vcvt.s32.f32 %v1097
          %v1100 = vcvt.s32.f32 %v1098
          %1101 = vmin.xlane.f32.xlu0 %v1100
          %v1102 = vpop.xlane.xlu0 %1101
          %vm1103 = vcmp.eq.f32.partialorder %v1100, %v1102
          %v1104 = vsel %vm1103, %v1099, inf
          %1105 = vmin.xlane.f32.xlu0 %v1104
          %v1106 = vpop.xlane.xlu0 %1105
          %v1107 = vcvt.f32.s32 %v1106
          %v1108 = vcvt.f32.s32 %v1102
          %v1109 = vshll.u32 %v1108, 16
          %v1110 = vadd.s32 %v1109, %v1107
          %v1111 = vsel %vm1010, %v1079, 2147483647
          %v1112 = vand.u32 %v1111, 65535
          %v1113 = vshra.s32 %v1111, 16
          %v1114 = vcvt.s32.f32 %v1112
          %v1115 = vcvt.s32.f32 %v1113
          %1116 = vmin.xlane.f32.xlu0 %v1115
          %v1117 = vpop.xlane.xlu0 %1116
          %vm1118 = vcmp.eq.f32.partialorder %v1115, %v1117
          %v1119 = vsel %vm1118, %v1114, inf
          %1120 = vmin.xlane.f32.xlu0 %v1119
          %v1121 = vpop.xlane.xlu0 %1120
          %v1122 = vcvt.f32.s32 %v1121
          %v1123 = vcvt.f32.s32 %v1117
          %v1124 = vshll.u32 %v1123, 16
          %v1125 = vadd.s32 %v1124, %v1122
          %v1126 = vsel %vm1010, %v1080, 2147483647
          %v1127 = vand.u32 %v1126, 65535
          %v1128 = vshra.s32 %v1126, 16
          %v1129 = vcvt.s32.f32 %v1127
          %v1130 = vcvt.s32.f32 %v1128
          %1131 = vmin.xlane.f32.xlu0 %v1130
          %v1132 = vpop.xlane.xlu0 %1131
          %vm1133 = vcmp.eq.f32.partialorder %v1130, %v1132
          %v1134 = vsel %vm1133, %v1129, inf
          %1135 = vmin.xlane.f32.xlu0 %v1134
          %v1136 = vpop.xlane.xlu0 %1135
          %v1137 = vcvt.f32.s32 %v1136
          %v1138 = vcvt.f32.s32 %v1132
          %v1139 = vshll.u32 %v1138, 16
          %v1140 = vadd.s32 %v1139, %v1137
          %vm1141 = vcmp.eq.s32.totalorder %v1072, %v1095
          %vm1142 = vcmp.eq.s32.totalorder %v1072, %v1110
          %vm1143 = vcmp.eq.s32.totalorder %v1072, %v1125
          %vm1144 = vcmp.eq.s32.totalorder %v1072, %v1140
          %v1145 = vsel %vm1141, 1, 0
          %v1146 = vsel %vm1142, 1, 0
          %v1147 = vsel %vm1143, 1, 0
          %v1148 = vsel %vm1144, 1, 0
          %v1149 = vcvt.s32.f32 %v1145
          %v1150 = vcvt.s32.f32 %v1146
          %v1151 = vcvt.s32.f32 %v1147
          %v1152 = vcvt.s32.f32 %v1148
          %v1153 = vld [vmem:[#allocation3] sm:$0xf]
          %v1154 = vld [vmem:[#allocation3 + $0x4] sm:$0xf]
          %v1155 = vld [vmem:[#allocation3 + $0x8] sm:$0xf]
          %v1156 = vld [vmem:[#allocation3 + $0xc] sm:$0xf]
          %1158 = vset.pattern.permute.xlu0 0
          %1159 = vperm.xlu0 %1158, %v1153
          %v1160 = vpop.permute.xlu0 %1159
          %1163 = vset.pattern.permute.xlu0 0
          %1164 = vperm.xlu0 %1163, %v1154
          %v1165 = vpop.permute.xlu0 %1164
          %1168 = vset.pattern.permute.xlu0 0
          %1169 = vperm.xlu0 %1168, %v1155
          %v1170 = vpop.permute.xlu0 %1169
          %1173 = vset.pattern.permute.xlu0 0
          %1174 = vperm.xlu0 %1173, %v1156
          %v1175 = vpop.permute.xlu0 %1174
          %v1177 = vmul.f32 %v1160, %v1149
          %v1178 = vmul.f32 %v1165, %v1150
          %v1179 = vmul.f32 %v1170, %v1151
          %v1180 = vmul.f32 %v1175, %v1152
          %v1181 = vsub.f32 %v295, %v363
          %v1182 = vsub.f32 %v296, %v364
          %v1183 = vsub.f32 %v297, %v365
          %v1184 = vsub.f32 %v298, %v366
          %v1185 = vsub.f32 %v299, %v367
          %v1186 = vsub.f32 %v300, %v368
          %v1187 = vsub.f32 %v301, %v369
          %v1188 = vsub.f32 %v302, %v370
          %v1189 = vsub.f32 %v303, %v371
          %v1190 = vsub.f32 %v304, %v372
          %v1191 = vsub.f32 %v305, %v373
          %v1192 = vsub.f32 %v306, %v374
          %v1193 = vsub.f32 %v307, %v375
          %v1194 = vsub.f32 %v308, %v376
          %v1195 = vsub.f32 %v309, %v377
          %v1196 = vsub.f32 %v310, %v378
          %v1197 = vmul.f32 %v1181, %v1181
          %v1198 = vmul.f32 %v1182, %v1182
          %v1199 = vmul.f32 %v1183, %v1183
          %v1200 = vmul.f32 %v1184, %v1184
          %v1201 = vmul.f32 %v1185, %v1185
          %v1202 = vmul.f32 %v1186, %v1186
          %v1203 = vmul.f32 %v1187, %v1187
          %v1204 = vmul.f32 %v1188, %v1188
          %v1205 = vmul.f32 %v1189, %v1189
          %v1206 = vmul.f32 %v1190, %v1190
          %v1207 = vmul.f32 %v1191, %v1191
          %v1208 = vmul.f32 %v1192, %v1192
          %v1209 = vmul.f32 %v1193, %v1193
          %v1210 = vmul.f32 %v1194, %v1194
          %v1211 = vmul.f32 %v1195, %v1195
          %v1212 = vmul.f32 %v1196, %v1196
          %v1213 = vsel %vm1010, %v1197, 0.0
          %1214 = vadd.xlane.f32.xlu0 %v1213
          %v1215 = vpop.xlane.xlu0 %1214
          %v1216 = vsel %vm1010, %v1198, 0.0
          %1217 = vadd.xlane.f32.xlu0 %v1216
          %v1218 = vpop.xlane.xlu0 %1217
          %v1219 = vsel %vm1010, %v1199, 0.0
          %1220 = vadd.xlane.f32.xlu0 %v1219
          %v1221 = vpop.xlane.xlu0 %1220
          %v1222 = vsel %vm1010, %v1200, 0.0
          %1223 = vadd.xlane.f32.xlu0 %v1222
          %v1224 = vpop.xlane.xlu0 %1223
          %v1225 = vsel %vm1010, %v1201, 0.0
          %1226 = vadd.xlane.f32.xlu0 %v1225
          %v1227 = vpop.xlane.xlu0 %1226
          %v1228 = vsel %vm1010, %v1202, 0.0
          %1229 = vadd.xlane.f32.xlu0 %v1228
          %v1230 = vpop.xlane.xlu0 %1229
          %v1231 = vsel %vm1010, %v1203, 0.0
          %1232 = vadd.xlane.f32.xlu0 %v1231
          %v1233 = vpop.xlane.xlu0 %1232
          %v1234 = vsel %vm1010, %v1204, 0.0
          %1235 = vadd.xlane.f32.xlu0 %v1234
          %v1236 = vpop.xlane.xlu0 %1235
          %v1237 = vsel %vm1010, %v1205, 0.0
          %1238 = vadd.xlane.f32.xlu0 %v1237
          %v1239 = vpop.xlane.xlu0 %1238
          %v1240 = vsel %vm1010, %v1206, 0.0
          %1241 = vadd.xlane.f32.xlu0 %v1240
          %v1242 = vpop.xlane.xlu0 %1241
          %v1243 = vsel %vm1010, %v1207, 0.0
          %1244 = vadd.xlane.f32.xlu0 %v1243
          %v1245 = vpop.xlane.xlu0 %1244
          %v1246 = vsel %vm1010, %v1208, 0.0
          %1247 = vadd.xlane.f32.xlu0 %v1246
          %v1248 = vpop.xlane.xlu0 %1247
          %v1249 = vsel %vm1010, %v1209, 0.0
          %1250 = vadd.xlane.f32.xlu0 %v1249
          %v1251 = vpop.xlane.xlu0 %1250
          %v1252 = vsel %vm1010, %v1210, 0.0
          %1253 = vadd.xlane.f32.xlu0 %v1252
          %v1254 = vpop.xlane.xlu0 %1253
          %v1255 = vsel %vm1010, %v1211, 0.0
          %1256 = vadd.xlane.f32.xlu0 %v1255
          %v1257 = vpop.xlane.xlu0 %1256
          %v1258 = vsel %vm1010, %v1212, 0.0
          %1259 = vadd.xlane.f32.xlu0 %v1258
          %v1260 = vpop.xlane.xlu0 %1259
          %v1262 = vlaneseq
          %v1263 = vshrl.u32 %v1262, 7
          %v1264 = vsub.s32 0, %v1263
          %v1265 = vrot.slane %v433, %v1264
          %v1266 = vlaneseq
          %v1267 = vshrl.u32 %v1266, 7
          %v1268 = vsub.s32 1, %v1267
          %v1269 = vrot.slane %v433, %v1268
          %v1270 = vlaneseq
          %v1271 = vshrl.u32 %v1270, 7
          %v1272 = vsub.s32 2, %v1271
          %v1273 = vrot.slane %v433, %v1272
          %v1274 = vlaneseq
          %v1275 = vshrl.u32 %v1274, 7
          %v1276 = vsub.s32 3, %v1275
          %v1277 = vrot.slane %v433, %v1276
          %v1282 = vadd.f32 %v312, %v1265
          %v1283 = vadd.f32 %v313, %v1269
          %v1284 = vadd.f32 %v314, %v1273
          %v1285 = vadd.f32 %v315, %v1277
          %v1286 = vadd.f32 %v316, %v1265
          %v1287 = vadd.f32 %v317, %v1269
          %v1288 = vadd.f32 %v318, %v1273
          %v1289 = vadd.f32 %v319, %v1277
          %v1290 = vadd.f32 %v320, %v1265
          %v1291 = vadd.f32 %v321, %v1269
          %v1292 = vadd.f32 %v322, %v1273
          %v1293 = vadd.f32 %v323, %v1277
          %v1294 = vadd.f32 %v324, %v1265
          %v1295 = vadd.f32 %v325, %v1269
          %v1296 = vadd.f32 %v326, %v1273
          %v1297 = vadd.f32 %v327, %v1277
          %v1302 = vlaneseq
          %v1303 = vshrl.u32 %v1302, 7
          %v1304 = vsub.s32 0, %v1303
          %v1305 = vrot.slane %v1067, %v1304
          %v1306 = vlaneseq
          %v1307 = vshrl.u32 %v1306, 7
          %v1308 = vsub.s32 1, %v1307
          %v1309 = vrot.slane %v1067, %v1308
          %v1310 = vlaneseq
          %v1311 = vshrl.u32 %v1310, 7
          %v1312 = vsub.s32 2, %v1311
          %v1313 = vrot.slane %v1067, %v1312
          %v1314 = vlaneseq
          %v1315 = vshrl.u32 %v1314, 7
          %v1316 = vsub.s32 3, %v1315
          %v1317 = vrot.slane %v1067, %v1316
          %v1318 = vlaneseq
          %v1319 = vshrl.u32 %v1318, 7
          %v1320 = vsub.s32 0, %v1319
          %v1321 = vrot.slane %v1068, %v1320
          %v1322 = vlaneseq
          %v1323 = vshrl.u32 %v1322, 7
          %v1324 = vsub.s32 1, %v1323
          %v1325 = vrot.slane %v1068, %v1324
          %v1326 = vlaneseq
          %v1327 = vshrl.u32 %v1326, 7
          %v1328 = vsub.s32 2, %v1327
          %v1329 = vrot.slane %v1068, %v1328
          %v1330 = vlaneseq
          %v1331 = vshrl.u32 %v1330, 7
          %v1332 = vsub.s32 3, %v1331
          %v1333 = vrot.slane %v1068, %v1332
          %v1334 = vlaneseq
          %v1335 = vshrl.u32 %v1334, 7
          %v1336 = vsub.s32 0, %v1335
          %v1337 = vrot.slane %v1069, %v1336
          %v1338 = vlaneseq
          %v1339 = vshrl.u32 %v1338, 7
          %v1340 = vsub.s32 1, %v1339
          %v1341 = vrot.slane %v1069, %v1340
          %v1342 = vlaneseq
          %v1343 = vshrl.u32 %v1342, 7
          %v1344 = vsub.s32 2, %v1343
          %v1345 = vrot.slane %v1069, %v1344
          %v1346 = vlaneseq
          %v1347 = vshrl.u32 %v1346, 7
          %v1348 = vsub.s32 3, %v1347
          %v1349 = vrot.slane %v1069, %v1348
          %v1350 = vlaneseq
          %v1351 = vshrl.u32 %v1350, 7
          %v1352 = vsub.s32 0, %v1351
          %v1353 = vrot.slane %v1070, %v1352
          %v1354 = vlaneseq
          %v1355 = vshrl.u32 %v1354, 7
          %v1356 = vsub.s32 1, %v1355
          %v1357 = vrot.slane %v1070, %v1356
          %v1358 = vlaneseq
          %v1359 = vshrl.u32 %v1358, 7
          %v1360 = vsub.s32 2, %v1359
          %v1361 = vrot.slane %v1070, %v1360
          %v1362 = vlaneseq
          %v1363 = vshrl.u32 %v1362, 7
          %v1364 = vsub.s32 3, %v1363
          %v1365 = vrot.slane %v1070, %v1364
          %v1382 = vsub.f32 %v1282, %v1305
          %v1383 = vsub.f32 %v1283, %v1309
          %v1384 = vsub.f32 %v1284, %v1313
          %v1385 = vsub.f32 %v1285, %v1317
          %v1386 = vsub.f32 %v1286, %v1321
          %v1387 = vsub.f32 %v1287, %v1325
          %v1388 = vsub.f32 %v1288, %v1329
          %v1389 = vsub.f32 %v1289, %v1333
          %v1390 = vsub.f32 %v1290, %v1337
          %v1391 = vsub.f32 %v1291, %v1341
          %v1392 = vsub.f32 %v1292, %v1345
          %v1393 = vsub.f32 %v1293, %v1349
          %v1394 = vsub.f32 %v1294, %v1353
          %v1395 = vsub.f32 %v1295, %v1357
          %v1396 = vsub.f32 %v1296, %v1361
          %v1397 = vsub.f32 %v1297, %v1365
          %v1398 = vmul.f32 %v1382, %v1382
          %v1399 = vmul.f32 %v1383, %v1383
          %v1400 = vmul.f32 %v1384, %v1384
          %v1401 = vmul.f32 %v1385, %v1385
          %v1402 = vmul.f32 %v1386, %v1386
          %v1403 = vmul.f32 %v1387, %v1387
          %v1404 = vmul.f32 %v1388, %v1388
          %v1405 = vmul.f32 %v1389, %v1389
          %v1406 = vmul.f32 %v1390, %v1390
          %v1407 = vmul.f32 %v1391, %v1391
          %v1408 = vmul.f32 %v1392, %v1392
          %v1409 = vmul.f32 %v1393, %v1393
          %v1410 = vmul.f32 %v1394, %v1394
          %v1411 = vmul.f32 %v1395, %v1395
          %v1412 = vmul.f32 %v1396, %v1396
          %v1413 = vmul.f32 %v1397, %v1397
          %1430 = vset.pattern.permute.xlu0 0
          %1431 = vperm.xlu0 %1430, %v1398
          %v1432 = vpop.permute.xlu0 %1431
          %1433 = vset.pattern.permute.xlu0 0
          %1434 = vperm.xlu0 %1433, %v1399
          %v1435 = vpop.permute.xlu0 %1434
          %1436 = vset.pattern.permute.xlu0 0
          %1437 = vperm.xlu0 %1436, %v1400
          %v1438 = vpop.permute.xlu0 %1437
          %1439 = vset.pattern.permute.xlu0 0
          %1440 = vperm.xlu0 %1439, %v1401
          %v1441 = vpop.permute.xlu0 %1440
          %1442 = vset.pattern.permute.xlu0 0
          %1443 = vperm.xlu0 %1442, %v1402
          %v1444 = vpop.permute.xlu0 %1443
          %1445 = vset.pattern.permute.xlu0 0
          %1446 = vperm.xlu0 %1445, %v1403
          %v1447 = vpop.permute.xlu0 %1446
          %1448 = vset.pattern.permute.xlu0 0
          %1449 = vperm.xlu0 %1448, %v1404
          %v1450 = vpop.permute.xlu0 %1449
          %1451 = vset.pattern.permute.xlu0 0
          %1452 = vperm.xlu0 %1451, %v1405
          %v1453 = vpop.permute.xlu0 %1452
          %1454 = vset.pattern.permute.xlu0 0
          %1455 = vperm.xlu0 %1454, %v1406
          %v1456 = vpop.permute.xlu0 %1455
          %1457 = vset.pattern.permute.xlu0 0
          %1458 = vperm.xlu0 %1457, %v1407
          %v1459 = vpop.permute.xlu0 %1458
          %1460 = vset.pattern.permute.xlu0 0
          %1461 = vperm.xlu0 %1460, %v1408
          %v1462 = vpop.permute.xlu0 %1461
          %1463 = vset.pattern.permute.xlu0 0
          %1464 = vperm.xlu0 %1463, %v1409
          %v1465 = vpop.permute.xlu0 %1464
          %1466 = vset.pattern.permute.xlu0 0
          %1467 = vperm.xlu0 %1466, %v1410
          %v1468 = vpop.permute.xlu0 %1467
          %1469 = vset.pattern.permute.xlu0 0
          %1470 = vperm.xlu0 %1469, %v1411
          %v1471 = vpop.permute.xlu0 %1470
          %1472 = vset.pattern.permute.xlu0 0
          %1473 = vperm.xlu0 %1472, %v1412
          %v1474 = vpop.permute.xlu0 %1473
          %1475 = vset.pattern.permute.xlu0 0
          %1476 = vperm.xlu0 %1475, %v1413
          %v1477 = vpop.permute.xlu0 %1476
          %v1478 = vlaneseq
          %v1479 = vshrl.u32 %v1478, 7
          %v1480 = vsub.s32 %v1072, %v1479
          %v1481 = vrot.slane %v1432, %v1480
          %v1482 = vlaneseq
          %v1483 = vshrl.u32 %v1482, 7
          %v1484 = vsub.s32 %v1072, %v1483
          %v1485 = vrot.slane %v1435, %v1484
          %v1486 = vlaneseq
          %v1487 = vshrl.u32 %v1486, 7
          %v1488 = vsub.s32 %v1072, %v1487
          %v1489 = vrot.slane %v1438, %v1488
          %v1490 = vlaneseq
          %v1491 = vshrl.u32 %v1490, 7
          %v1492 = vsub.s32 %v1072, %v1491
          %v1493 = vrot.slane %v1441, %v1492
          %v1494 = vlaneseq
          %v1495 = vshrl.u32 %v1494, 7
          %v1496 = vsub.s32 %v1072, %v1495
          %v1497 = vrot.slane %v1444, %v1496
          %v1498 = vlaneseq
          %v1499 = vshrl.u32 %v1498, 7
          %v1500 = vsub.s32 %v1072, %v1499
          %v1501 = vrot.slane %v1447, %v1500
          %v1502 = vlaneseq
          %v1503 = vshrl.u32 %v1502, 7
          %v1504 = vsub.s32 %v1072, %v1503
          %v1505 = vrot.slane %v1450, %v1504
          %v1506 = vlaneseq
          %v1507 = vshrl.u32 %v1506, 7
          %v1508 = vsub.s32 %v1072, %v1507
          %v1509 = vrot.slane %v1453, %v1508
          %v1510 = vlaneseq
          %v1511 = vshrl.u32 %v1510, 7
          %v1512 = vsub.s32 %v1072, %v1511
          %v1513 = vrot.slane %v1456, %v1512
          %v1514 = vlaneseq
          %v1515 = vshrl.u32 %v1514, 7
          %v1516 = vsub.s32 %v1072, %v1515
          %v1517 = vrot.slane %v1459, %v1516
          %v1518 = vlaneseq
          %v1519 = vshrl.u32 %v1518, 7
          %v1520 = vsub.s32 %v1072, %v1519
          %v1521 = vrot.slane %v1462, %v1520
          %v1522 = vlaneseq
          %v1523 = vshrl.u32 %v1522, 7
          %v1524 = vsub.s32 %v1072, %v1523
          %v1525 = vrot.slane %v1465, %v1524
          %v1526 = vlaneseq
          %v1527 = vshrl.u32 %v1526, 7
          %v1528 = vsub.s32 %v1072, %v1527
          %v1529 = vrot.slane %v1468, %v1528
          %v1530 = vlaneseq
          %v1531 = vshrl.u32 %v1530, 7
          %v1532 = vsub.s32 %v1072, %v1531
          %v1533 = vrot.slane %v1471, %v1532
          %v1534 = vlaneseq
          %v1535 = vshrl.u32 %v1534, 7
          %v1536 = vsub.s32 %v1072, %v1535
          %v1537 = vrot.slane %v1474, %v1536
          %v1538 = vlaneseq
          %v1539 = vshrl.u32 %v1538, 7
          %v1540 = vsub.s32 %v1072, %v1539
          %v1541 = vrot.slane %v1477, %v1540
          %vm1542 = vcmask 1041409
          %v1543 = vsel %vm1542, %v1485, %v1481
          %vm1544 = vcmask 1042434
          %v1545 = vsel %vm1544, %v1489, %v1543
          %vm1546 = vcmask 1043459
          %v1547 = vsel %vm1546, %v1493, %v1545
          %v1548 = vsel %vm1542, %v1501, %v1497
          %v1549 = vsel %vm1544, %v1505, %v1548
          %v1550 = vsel %vm1546, %v1509, %v1549
          %v1551 = vsel %vm1542, %v1517, %v1513
          %v1552 = vsel %vm1544, %v1521, %v1551
          %v1553 = vsel %vm1546, %v1525, %v1552
          %v1554 = vsel %vm1542, %v1533, %v1529
          %v1555 = vsel %vm1544, %v1537, %v1554
          %v1556 = vsel %vm1546, %v1541, %v1555
          %v1561 = vmul.f32 %v1177, %v1547
          %v1562 = vmul.f32 %v1178, %v1550
          %v1563 = vmul.f32 %v1179, %v1553
          %v1564 = vmul.f32 %v1180, %v1556
          %v1565 = vsub.f32 4.0, %v1177
          %v1566 = vsub.f32 4.0, %v1178
          %v1567 = vsub.f32 4.0, %v1179
          %v1568 = vsub.f32 4.0, %v1180
          %v1569 = vmul.f32 %v1282, %v1282
          %v1570 = vmul.f32 %v1283, %v1283
          %v1571 = vmul.f32 %v1284, %v1284
          %v1572 = vmul.f32 %v1285, %v1285
          %v1573 = vmul.f32 %v1286, %v1286
          %v1574 = vmul.f32 %v1287, %v1287
          %v1575 = vmul.f32 %v1288, %v1288
          %v1576 = vmul.f32 %v1289, %v1289
          %v1577 = vmul.f32 %v1290, %v1290
          %v1578 = vmul.f32 %v1291, %v1291
          %v1579 = vmul.f32 %v1292, %v1292
          %v1580 = vmul.f32 %v1293, %v1293
          %v1581 = vmul.f32 %v1294, %v1294
          %v1582 = vmul.f32 %v1295, %v1295
          %v1583 = vmul.f32 %v1296, %v1296
          %v1584 = vmul.f32 %v1297, %v1297
          %1601 = vset.pattern.permute.xlu0 0
          %1602 = vperm.xlu0 %1601, %v1569
          %v1603 = vpop.permute.xlu0 %1602
          %1604 = vset.pattern.permute.xlu0 0
          %1605 = vperm.xlu0 %1604, %v1570
          %v1606 = vpop.permute.xlu0 %1605
          %1607 = vset.pattern.permute.xlu0 0
          %1608 = vperm.xlu0 %1607, %v1571
          %v1609 = vpop.permute.xlu0 %1608
          %1610 = vset.pattern.permute.xlu0 0
          %1611 = vperm.xlu0 %1610, %v1572
          %v1612 = vpop.permute.xlu0 %1611
          %1613 = vset.pattern.permute.xlu0 0
          %1614 = vperm.xlu0 %1613, %v1573
          %v1615 = vpop.permute.xlu0 %1614
          %1616 = vset.pattern.permute.xlu0 0
          %1617 = vperm.xlu0 %1616, %v1574
          %v1618 = vpop.permute.xlu0 %1617
          %1619 = vset.pattern.permute.xlu0 0
          %1620 = vperm.xlu0 %1619, %v1575
          %v1621 = vpop.permute.xlu0 %1620
          %1622 = vset.pattern.permute.xlu0 0
          %1623 = vperm.xlu0 %1622, %v1576
          %v1624 = vpop.permute.xlu0 %1623
          %1625 = vset.pattern.permute.xlu0 0
          %1626 = vperm.xlu0 %1625, %v1577
          %v1627 = vpop.permute.xlu0 %1626
          %1628 = vset.pattern.permute.xlu0 0
          %1629 = vperm.xlu0 %1628, %v1578
          %v1630 = vpop.permute.xlu0 %1629
          %1631 = vset.pattern.permute.xlu0 0
          %1632 = vperm.xlu0 %1631, %v1579
          %v1633 = vpop.permute.xlu0 %1632
          %1634 = vset.pattern.permute.xlu0 0
          %1635 = vperm.xlu0 %1634, %v1580
          %v1636 = vpop.permute.xlu0 %1635
          %1637 = vset.pattern.permute.xlu0 0
          %1638 = vperm.xlu0 %1637, %v1581
          %v1639 = vpop.permute.xlu0 %1638
          %1640 = vset.pattern.permute.xlu0 0
          %1641 = vperm.xlu0 %1640, %v1582
          %v1642 = vpop.permute.xlu0 %1641
          %1643 = vset.pattern.permute.xlu0 0
          %1644 = vperm.xlu0 %1643, %v1583
          %v1645 = vpop.permute.xlu0 %1644
          %1646 = vset.pattern.permute.xlu0 0
          %1647 = vperm.xlu0 %1646, %v1584
          %v1648 = vpop.permute.xlu0 %1647
          %v1649 = vlaneseq
          %v1650 = vshrl.u32 %v1649, 7
          %v1651 = vsub.s32 %v1072, %v1650
          %v1652 = vrot.slane %v1603, %v1651
          %v1653 = vlaneseq
          %v1654 = vshrl.u32 %v1653, 7
          %v1655 = vsub.s32 %v1072, %v1654
          %v1656 = vrot.slane %v1606, %v1655
          %v1657 = vlaneseq
          %v1658 = vshrl.u32 %v1657, 7
          %v1659 = vsub.s32 %v1072, %v1658
          %v1660 = vrot.slane %v1609, %v1659
          %v1661 = vlaneseq
          %v1662 = vshrl.u32 %v1661, 7
          %v1663 = vsub.s32 %v1072, %v1662
          %v1664 = vrot.slane %v1612, %v1663
          %v1665 = vlaneseq
          %v1666 = vshrl.u32 %v1665, 7
          %v1667 = vsub.s32 %v1072, %v1666
          %v1668 = vrot.slane %v1615, %v1667
          %v1669 = vlaneseq
          %v1670 = vshrl.u32 %v1669, 7
          %v1671 = vsub.s32 %v1072, %v1670
          %v1672 = vrot.slane %v1618, %v1671
          %v1673 = vlaneseq
          %v1674 = vshrl.u32 %v1673, 7
          %v1675 = vsub.s32 %v1072, %v1674
          %v1676 = vrot.slane %v1621, %v1675
          %v1677 = vlaneseq
          %v1678 = vshrl.u32 %v1677, 7
          %v1679 = vsub.s32 %v1072, %v1678
          %v1680 = vrot.slane %v1624, %v1679
          %v1681 = vlaneseq
          %v1682 = vshrl.u32 %v1681, 7
          %v1683 = vsub.s32 %v1072, %v1682
          %v1684 = vrot.slane %v1627, %v1683
          %v1685 = vlaneseq
          %v1686 = vshrl.u32 %v1685, 7
          %v1687 = vsub.s32 %v1072, %v1686
          %v1688 = vrot.slane %v1630, %v1687
          %v1689 = vlaneseq
          %v1690 = vshrl.u32 %v1689, 7
          %v1691 = vsub.s32 %v1072, %v1690
          %v1692 = vrot.slane %v1633, %v1691
          %v1693 = vlaneseq
          %v1694 = vshrl.u32 %v1693, 7
          %v1695 = vsub.s32 %v1072, %v1694
          %v1696 = vrot.slane %v1636, %v1695
          %v1697 = vlaneseq
          %v1698 = vshrl.u32 %v1697, 7
          %v1699 = vsub.s32 %v1072, %v1698
          %v1700 = vrot.slane %v1639, %v1699
          %v1701 = vlaneseq
          %v1702 = vshrl.u32 %v1701, 7
          %v1703 = vsub.s32 %v1072, %v1702
          %v1704 = vrot.slane %v1642, %v1703
          %v1705 = vlaneseq
          %v1706 = vshrl.u32 %v1705, 7
          %v1707 = vsub.s32 %v1072, %v1706
          %v1708 = vrot.slane %v1645, %v1707
          %v1709 = vlaneseq
          %v1710 = vshrl.u32 %v1709, 7
          %v1711 = vsub.s32 %v1072, %v1710
          %v1712 = vrot.slane %v1648, %v1711
          %v1713 = vsel %vm1542, %v1656, %v1652
          %v1714 = vsel %vm1544, %v1660, %v1713
          %v1715 = vsel %vm1546, %v1664, %v1714
          %v1716 = vsel %vm1542, %v1672, %v1668
          %v1717 = vsel %vm1544, %v1676, %v1716
          %v1718 = vsel %vm1546, %v1680, %v1717
          %v1719 = vsel %vm1542, %v1688, %v1684
          %v1720 = vsel %vm1544, %v1692, %v1719
          %v1721 = vsel %vm1546, %v1696, %v1720
          %v1722 = vsel %vm1542, %v1704, %v1700
          %v1723 = vsel %vm1544, %v1708, %v1722
          %v1724 = vsel %vm1546, %v1712, %v1723
          %v1729 = vmul.f32 %v1565, %v1715
          %v1730 = vmul.f32 %v1566, %v1718
          %v1731 = vmul.f32 %v1567, %v1721
          %v1732 = vmul.f32 %v1568, %v1724
          %v1749 = vlaneseq
          %v1750 = vshrl.u32 %v1749, 7
          %v1751 = vsub.s32 %v1072, %v1750
          %v1752 = vrot.slane %v1215, %v1751
          %v1753 = vlaneseq
          %v1754 = vshrl.u32 %v1753, 7
          %v1755 = vsub.s32 %v1072, %v1754
          %v1756 = vrot.slane %v1218, %v1755
          %v1757 = vlaneseq
          %v1758 = vshrl.u32 %v1757, 7
          %v1759 = vsub.s32 %v1072, %v1758
          %v1760 = vrot.slane %v1221, %v1759
          %v1761 = vlaneseq
          %v1762 = vshrl.u32 %v1761, 7
          %v1763 = vsub.s32 %v1072, %v1762
          %v1764 = vrot.slane %v1224, %v1763
          %v1765 = vlaneseq
          %v1766 = vshrl.u32 %v1765, 7
          %v1767 = vsub.s32 %v1072, %v1766
          %v1768 = vrot.slane %v1227, %v1767
          %v1769 = vlaneseq
          %v1770 = vshrl.u32 %v1769, 7
          %v1771 = vsub.s32 %v1072, %v1770
          %v1772 = vrot.slane %v1230, %v1771
          %v1773 = vlaneseq
          %v1774 = vshrl.u32 %v1773, 7
          %v1775 = vsub.s32 %v1072, %v1774
          %v1776 = vrot.slane %v1233, %v1775
          %v1777 = vlaneseq
          %v1778 = vshrl.u32 %v1777, 7
          %v1779 = vsub.s32 %v1072, %v1778
          %v1780 = vrot.slane %v1236, %v1779
          %v1781 = vlaneseq
          %v1782 = vshrl.u32 %v1781, 7
          %v1783 = vsub.s32 %v1072, %v1782
          %v1784 = vrot.slane %v1239, %v1783
          %v1785 = vlaneseq
          %v1786 = vshrl.u32 %v1785, 7
          %v1787 = vsub.s32 %v1072, %v1786
          %v1788 = vrot.slane %v1242, %v1787
          %v1789 = vlaneseq
          %v1790 = vshrl.u32 %v1789, 7
          %v1791 = vsub.s32 %v1072, %v1790
          %v1792 = vrot.slane %v1245, %v1791
          %v1793 = vlaneseq
          %v1794 = vshrl.u32 %v1793, 7
          %v1795 = vsub.s32 %v1072, %v1794
          %v1796 = vrot.slane %v1248, %v1795
          %v1797 = vlaneseq
          %v1798 = vshrl.u32 %v1797, 7
          %v1799 = vsub.s32 %v1072, %v1798
          %v1800 = vrot.slane %v1251, %v1799
          %v1801 = vlaneseq
          %v1802 = vshrl.u32 %v1801, 7
          %v1803 = vsub.s32 %v1072, %v1802
          %v1804 = vrot.slane %v1254, %v1803
          %v1805 = vlaneseq
          %v1806 = vshrl.u32 %v1805, 7
          %v1807 = vsub.s32 %v1072, %v1806
          %v1808 = vrot.slane %v1257, %v1807
          %v1809 = vlaneseq
          %v1810 = vshrl.u32 %v1809, 7
          %v1811 = vsub.s32 %v1072, %v1810
          %v1812 = vrot.slane %v1260, %v1811
          %v1813 = vsel %vm1542, %v1756, %v1752
          %v1814 = vsel %vm1544, %v1760, %v1813
          %v1815 = vsel %vm1546, %v1764, %v1814
          %v1816 = vsel %vm1542, %v1772, %v1768
          %v1817 = vsel %vm1544, %v1776, %v1816
          %v1818 = vsel %vm1546, %v1780, %v1817
          %v1819 = vsel %vm1542, %v1788, %v1784
          %v1820 = vsel %vm1544, %v1792, %v1819
          %v1821 = vsel %vm1546, %v1796, %v1820
          %v1822 = vsel %vm1542, %v1804, %v1800
          %v1823 = vsel %vm1544, %v1808, %v1822
          %v1824 = vsel %vm1546, %v1812, %v1823
          %v1829 = vmul.f32 %v1177, %v1815
          %v1830 = vmul.f32 %v1178, %v1818
          %v1831 = vmul.f32 %v1179, %v1821
          %v1832 = vmul.f32 %v1180, %v1824
          %v1833 = vmul.f32 %v1829, 5.0
          %v1834 = vmul.f32 %v1830, 5.0
          %v1835 = vmul.f32 %v1831, 5.0
          %v1836 = vmul.f32 %v1832, 5.0
          %v1837 = vadd.f32 %v1833, %v1561
          %v1838 = vadd.f32 %v1834, %v1562
          %v1839 = vadd.f32 %v1835, %v1563
          %v1840 = vadd.f32 %v1836, %v1564
          %v1841 = vmul.f32 %v1729, 0.5
          %v1842 = vmul.f32 %v1730, 0.5
          %v1843 = vmul.f32 %v1731, 0.5
          %v1844 = vmul.f32 %v1732, 0.5
          %v1845 = vadd.f32 %v1837, %v1841
          %v1846 = vadd.f32 %v1838, %v1842
          %v1847 = vadd.f32 %v1839, %v1843
          %v1848 = vadd.f32 %v1840, %v1844
          %v1849 = vsel %vm1010, %v1845, 0.0
          %v1850 = vsel %vm1010, %v1846, 0.0
          %v1851 = vadd.f32 %v1849, %v1850
          %v1852 = vsel %vm1010, %v1847, 0.0
          %v1853 = vadd.f32 %v1851, %v1852
          %v1854 = vsel %vm1010, %v1848, 0.0
          %v1855 = vadd.f32 %v1853, %v1854
          %1856 = vadd.xlane.f32.xlu0 %v1855
          %v1857 = vpop.xlane.xlu0 %1856
          %v1858 = vrot.slane %v1857, 4
          %v1859 = vadd.f32 %v1857, %v1858
          %v1860 = vrot.slane %v1859, 2
          %v1861 = vadd.f32 %v1859, %v1860
          %v1862 = vrot.slane %v1861, 1
          %v1863 = vadd.f32 %v1861, %v1862
          %s1864 = vtos %v1863
          %v1865 = vld [vmem:[#allocation2] sm:$0x1]
          %v1866 = vstv %s1864
          %v1867 = vadd.f32 %v1865, %v1866
          %v1868 = vmul.f32 %v1867, 0.25
          %1869 = vst.msk [vmem:[#allocation4] sm:$0x1] %vm264, %v1868
        $region40: #{tpu_custom_call.1} parent=31 // pred_fallthru
          _
        // Predicated region
        $region41: #{tpu_custom_call.1} parent=31 // pred_check
          %p1870 = pneg %p101
        $region42: #{tpu_custom_call.1} parent=31 // pred_check_branch
          %1872 = sbr.rel (%p1870) target = $region44
        $region43: #{tpu_custom_call.1} parent=31 // pred_region
          %s1874 = ssub.s32 16, 16
          %1875 = vsyncadd [#allocation5], %s1874
          %s1877 = sshll.u32 [#allocation4], 4
          %s1878 = int_to_ptr.vmem [resolvable:$true] %s1877
          %1880 = dma.vmem_to_hbm [thread:$0]  %s1878, 16, %s3, [#allocation5]
        $region44: #{tpu_custom_call.1} parent=31 // pred_fallthru
          _
        // Predicated region
        $region45: #{tpu_custom_call.1} parent=31 // pred_check
          %p1881 = pneg %p101
        $region46: #{tpu_custom_call.1} parent=31 // pred_check_branch
          %1883 = sbr.rel (%p1881) target = $region48
        $region47: #{tpu_custom_call.1} parent=31 // pred_region
          %1884 = dma.done [#allocation5], 16
        $region48: #{tpu_custom_call.1} parent=31 // pred_fallthru
          _
      $region32: #{tpu_custom_call.1} parent=5 // pred_fallthru
        _
      %p1885 = scmp.le.s32.totalorder 2, %s10
      // Predicated region
      $region49: #{tpu_custom_call.1} parent=5 // pred_check
        %p1886 = pneg %p1885
      $region50: #{tpu_custom_call.1} parent=5 // pred_check_branch
        %1888 = sbr.rel (%p1886) target = $region52
      $region51: #{tpu_custom_call.1} parent=5 // pred_region
        %s1889 = ssub.s32 %s10, 2
      $region52: #{tpu_custom_call.1} parent=5 // pred_fallthru
        _
    $region6: #{tpu_custom_call.1} parent=1 // loop_footer
      %s14 = sadd.s32 1, %s10
    $region7: #{tpu_custom_call.1} parent=1 // loop_footer_branch
      %9 = sbr.rel target = $region3
    $region8: #{tpu_custom_call.1} parent=1 // loop_exit
      _
    %1890 = vsyncpa [#allocation5], 1
    %s1891 = scalar_lea.sflag [#allocation5], 1
    %1892 = vsyncpa %s1891, 1

</llo_original>
